<compile_context>
chip_gen: v7x
topology: tpu7x:2x2x1
jax: 0.10.0
libtpu: 0.0.40
codegen_flags: <defaults>
</compile_context>

<pallas_src>
import numpy as np

import jax
import jax.numpy as jnp
from jax import lax
from jax.experimental import pallas as pl
from jax.experimental.pallas import tpu as pltpu


def _round_up(x, m):
    return ((x + m - 1) // m) * m


# ---------------------------------------------------------------------------
# Fused kernel: conv1(3x3,s2)+ReLU -> conv2(3x3,s2)+ReLU -> lane-dense output.
# One (batch element, time tile) per grid step.
#
#   x_ref : (TW1, H1, 9*Cin)  conv1 im2col patches (pre-built by the wrapper)
#   w1_ref: (9*Cin, C1)       conv1 weights (bf16), b1_ref: (1, C1) f32
#   w2_ref: (9*C1,  C2)       conv2 weights (bf16), b2_ref: (1, C2) f32
#   o_ref : (TW2, C2*H2)      output block, PyTorch (c-major, h-minor) order
#   y1_ref: (TW1, H1, C1)     f32 VMEM scratch holding relu(conv1)
# ---------------------------------------------------------------------------
def _conv2d_subsampling_kernel(x_ref, w1_ref, b1_ref, w2_ref, b2_ref,
                               o_ref, y1_ref):
    TW1, H1, C1 = y1_ref.shape
    TW2, F = o_ref.shape
    K1 = x_ref.shape[-1]
    C2 = w2_ref.shape[-1]
    H2 = F // C2

    # ---- conv1: one dense MXU matmul over the pre-im2col'ed block ----------
    patches1 = x_ref[...].reshape(TW1 * H1, K1).astype(w1_ref.dtype)
    y1 = jnp.dot(patches1, w1_ref[...], preferred_element_type=jnp.float32)
    y1 = jnp.maximum(y1 + b1_ref[...], 0.0)        # bias + ReLU in f32
    y1_ref[...] = y1.reshape(TW1, H1, C1)          # stays in VMEM only

    # ---- conv2: 9 stride-2 taps from the VMEM scratch -> lane concat -> matmul
    # (perf note: an even/odd-H deinterleaved y1 layout would make the kh taps
    #  contiguous and remove 6 of these 9 sublane-strided reads.)
    taps = []
    for kw in range(3):
        for kh in range(3):
            taps.append(y1_ref[pl.ds(kw, TW2, stride=2),
                               pl.ds(kh, H2, stride=2), :])
    patches2 = jnp.concatenate(taps, axis=-1).reshape(TW2 * H2, 9 * C1)
    y2 = jnp.dot(patches2.astype(w2_ref.dtype), w2_ref[...],
                 preferred_element_type=jnp.float32)
    y2 = jnp.maximum(y2 + b2_ref[...], 0.0)        # (TW2*H2, C2), f32

    # ---- epilogue: (TW2*H2, C2) -> (TW2, C2*H2) in PyTorch's c-major order,
    # written lane-dense in a single full-width store.  The minor-dims merge is
    # expressed as a per-channel lane concat (portable; avoids a shape-cast that
    # merges sublanes into lanes).
    y2t = jnp.transpose(y2.reshape(TW2, H2, C2), (0, 2, 1))   # (TW2, C2, H2)
    out = jnp.concatenate([y2t[:, c, :] for c in range(C2)], axis=-1)
    o_ref[...] = out.astype(o_ref.dtype)


# ---------------------------------------------------------------------------
# Module forward
# ---------------------------------------------------------------------------
def conv2d_subsampling_forward(x_nchw, input_lengths, params, *,
                               time_tile=None, mxu_dtype=jnp.bfloat16):
    """x_nchw: (B, Cin, H, W); weights are HWIO. Returns ((B, W2, C2*H2), lengths)."""
    B, Cin, H, W = x_nchw.shape
    w1, b1 = params["w1"], params["b1"]
    w2, b2 = params["w2"], params["b2"]
    C1, C2 = w1.shape[-1], w2.shape[-1]
    H1, W1 = (H - 3) // 2 + 1, (W - 3) // 2 + 1
    H2, W2 = (H1 - 3) // 2 + 1, (W1 - 3) // 2 + 1
    K1, K2, F = 9 * Cin, 9 * C1, C2 * H2

    # ---- time (W) tiling: TW2 output columns per grid step ------------------
    # Single tile for short inputs, else a multiple of 8 so every block keeps
    # the (8, 128) divisibility rule on its second-minor dim.
    if time_tile is None:
        time_tile = W2 if W2 <= 64 else 64
    tw2 = time_tile
    nw = pl.cdiv(W2, tw2)
    tw1 = 2 * tw2 + 1            # conv1 columns needed per tile (1-column halo)

    # ---- NCHW -> (B, W, H, Cin); conv1 im2col in XLA (input is small).
    # Feature order (kw, kh, ci) matches the weight matrices built below.
    x_whc = jnp.transpose(x_nchw, (0, 3, 2, 1))
    taps = []
    for kw in range(3):
        for kh in range(3):
            taps.append(x_whc[:, kw:kw + 2 * W1 - 1:2, kh:kh + 2 * H1 - 1:2, :])
    xim = jnp.concatenate(taps, axis=-1)             # (B, W1, H1, 9*Cin), f32

    # ---- per-tile chunks with the 1-column halo (overlapping windows cannot be
    # expressed with Blocked index maps, so the wrapper gathers them once; the
    # last tile is clamped and its padded columns are sliced off below).
    starts = 2 * tw2 * jnp.arange(nw, dtype=jnp.int32)
    col_idx = jnp.minimum(
        starts[:, None] + jnp.arange(tw1, dtype=jnp.int32)[None, :], W1 - 1)
    x_chunks = jnp.take(xim, col_idx, axis=1)        # (B, nW, TW1, H1, 9*Cin)

    # ---- im2col weight matrices (row = (kw*3+kh)*C + c), bf16 for the MXU ----
    w1m = jnp.transpose(w1, (1, 0, 2, 3)).reshape(K1, C1).astype(mxu_dtype)
    w2m = jnp.transpose(w2, (1, 0, 2, 3)).reshape(K2, C2).astype(mxu_dtype)
    b1m = b1.reshape(1, C1).astype(jnp.float32)
    b2m = b2.reshape(1, C2).astype(jnp.float32)

    # ---- VMEM budget derived from the actual (padded) block sizes -----------
    wsz = np.dtype(mxu_dtype).itemsize
    in_blk = tw1 * _round_up(H1, 8) * _round_up(K1, 128) * 4
    out_blk = _round_up(tw2, 8) * _round_up(F, 128) * 4
    wgt_blk = ((_round_up(K1, 16) * _round_up(C1, 128)
                + _round_up(K2, 16) * _round_up(C2, 128)) * wsz
               + (_round_up(C1, 128) + _round_up(C2, 128)) * 8 * 4)
    scr_blk = tw1 * _round_up(H1, 8) * _round_up(C1, 128) * 4
    vmem_needed = 2 * (in_blk + out_blk + wgt_blk) + scr_blk
    vmem_limit = int(min(max(2 * vmem_needed + (8 << 20), 32 << 20), 64 << 20))

    out_padded = pl.pallas_call(
        _conv2d_subsampling_kernel,
        out_shape=jax.ShapeDtypeStruct((B, nw * tw2, F), x_nchw.dtype),
        grid=(B, nw),
        in_specs=[
            pl.BlockSpec((None, None, tw1, H1, K1), lambda b, j: (b, j, 0, 0, 0)),
            pl.BlockSpec((K1, C1), lambda b, j: (0, 0)),
            pl.BlockSpec((1, C1), lambda b, j: (0, 0)),
            pl.BlockSpec((K2, C2), lambda b, j: (0, 0)),
            pl.BlockSpec((1, C2), lambda b, j: (0, 0)),
        ],
        out_specs=pl.BlockSpec((None, tw2, F), lambda b, j: (b, j, 0)),
        scratch_shapes=[pltpu.VMEM((tw1, H1, C1), jnp.float32)],
        compiler_params=pltpu.CompilerParams(
            dimension_semantics=("parallel", "parallel"),
            vmem_limit_bytes=vmem_limit,
        ),
    )(x_chunks, w1m, b1m, w2m, b2m)

    out = out_padded[:, :W2, :]                       # drop padded tail columns
    # output_lengths = (L >> 2) - 1, exactly as the PyTorch module (plain jnp).
    output_lengths = (input_lengths.astype(jnp.int32) >> 2) - 1
    return out, output_lengths


# ---------------------------------------------------------------------------
# Pure-JAX reference (mirrors PyTorch exactly, in NCHW) for verification.
# ---------------------------------------------------------------------------
def reference_forward(x_nchw, input_lengths, params):
    def conv(x, w_hwio, b):
        w_oihw = jnp.transpose(w_hwio, (3, 2, 0, 1))
        y = lax.conv_general_dilated(
            x, w_oihw, window_strides=(2, 2), padding="VALID",
            dimension_numbers=("NCHW", "OIHW", "NCHW"))
        return jnp.maximum(y + b.reshape(1, -1, 1, 1), 0.0)

    x = conv(x_nchw, params["w1"], params["b1"])
    x = conv(x, params["w2"], params["b2"])
    B, C, Hh, Ww = x.shape
    x = x.reshape(B, C * Hh, Ww)
    x = jnp.transpose(x, (0, 2, 1))
    out_len = (input_lengths.astype(jnp.int32) >> 2) - 1
    return x, out_len


if __name__ == "__main__":
    key = jax.random.PRNGKey(0)
    B, Cin, H, W = 2, 4, 16, 16
    Cout = 8

    k1, k2, k3, k4, k5 = jax.random.split(key, 5)
    scale1 = 1.0 / (Cin * 9) ** 0.5
    scale2 = 1.0 / (Cout * 9) ** 0.5
    params = {
        "w1": jax.random.uniform(k1, (3, 3, Cin, Cout), jnp.float32, -scale1, scale1),
        "b1": jax.random.uniform(k2, (Cout,), jnp.float32, -scale1, scale1),
        "w2": jax.random.uniform(k3, (3, 3, Cout, Cout), jnp.float32, -scale2, scale2),
        "b2": jax.random.uniform(k4, (Cout,), jnp.float32, -scale2, scale2),
    }

    x = jax.random.normal(k5, (B, Cin, H, W), jnp.float32)
    input_lengths = jnp.array([16, 12], dtype=jnp.int32)

    out, out_len = conv2d_subsampling_forward(x, input_lengths, params)
    out = jax.block_until_ready(out)
    out_len = jax.block_until_ready(out_len)

    ref_out, ref_len = reference_forward(x, input_lengths, params)
    assert out.shape == ref_out.shape, (out.shape, ref_out.shape)
    # bf16 MXU operands (f32 accumulation) -> relaxed tolerance vs the f32 reference.
    max_err = float(jnp.max(jnp.abs(out - ref_out)))
    assert max_err < 2e-2, f"conv output mismatch, max abs err = {max_err}"
    assert jnp.array_equal(out_len, ref_len), "length mismatch"

    print("KERNEL_OK")
</pallas_src>

<mosaic_0001>
module attributes {stable_mosaic.version = 11 : i64} {
  func.func @_conv2d_subsampling_kernel(%arg0: i32, %arg1: i32, %arg2: memref<1x1x7x7x36xf32, #tpu.memory_space<vmem>>, %arg3: memref<36x8xbf16, #tpu.memory_space<vmem>>, %arg4: memref<1x8xf32, #tpu.memory_space<vmem>>, %arg5: memref<72x8xbf16, #tpu.memory_space<vmem>>, %arg6: memref<1x8xf32, #tpu.memory_space<vmem>>, %arg7: memref<1x3x24xf32, #tpu.memory_space<vmem>>, %arg8: memref<7x7x8xf32, #tpu.memory_space<vmem>>) attributes {dimension_semantics = [#tpu.dimension_semantics<parallel>, #tpu.dimension_semantics<parallel>], iteration_bounds = array<i64: 2, 1>, scalar_prefetch = 0 : i64, scratch_operands = 1 : i64, tpu.core_type = #tpu.core_type<tc>, window_params = [{transform_indices = @transform_0, window_bounds = array<i64: 1, 1, 7, 7, 36>}, {pipeline_mode = #tpu.pipeline_mode<synchronous>, transform_indices = @transform_1, window_bounds = array<i64: 36, 8>}, {pipeline_mode = #tpu.pipeline_mode<synchronous>, transform_indices = @transform_2, window_bounds = array<i64: 1, 8>}, {pipeline_mode = #tpu.pipeline_mode<synchronous>, transform_indices = @transform_3, window_bounds = array<i64: 72, 8>}, {pipeline_mode = #tpu.pipeline_mode<synchronous>, transform_indices = @transform_4, window_bounds = array<i64: 1, 8>}, {transform_indices = @transform_5, window_bounds = array<i64: 1, 3, 24>}]} {
    %c0 = arith.constant 0 : index
    %c0_0 = arith.constant 0 : index
    %c0_1 = arith.constant 0 : index
    %c0_2 = arith.constant 0 : index
    %c0_3 = arith.constant 0 : index
    %0 = vector.load %arg2[%c0, %c0_0, %c0_1, %c0_2, %c0_3] : memref<1x1x7x7x36xf32, #tpu.memory_space<vmem>>, vector<1x1x7x7x36xf32>
    %1 = vector.shape_cast %0 : vector<1x1x7x7x36xf32> to vector<7x7x36xf32>
    %2 = vector.shape_cast %1 : vector<7x7x36xf32> to vector<49x36xf32>
    %3 = arith.truncf %2 : vector<49x36xf32> to vector<49x36xbf16>
    %c0_4 = arith.constant 0 : index
    %c0_5 = arith.constant 0 : index
    %4 = vector.load %arg3[%c0_4, %c0_5] : memref<36x8xbf16, #tpu.memory_space<vmem>>, vector<36x8xbf16>
    %cst = arith.constant dense<0.000000e+00> : vector<49x8xf32>
    %5 = tpu.matmul %3, %4, %cst {dimension_numbers = #tpu.dot_dimension_numbers<[1], [0], [0], [1], [0, 0, 1, 1], [], []>} : vector<49x36xbf16>, vector<36x8xbf16>, vector<49x8xf32> -> vector<49x8xf32>
    %c0_6 = arith.constant 0 : index
    %c0_7 = arith.constant 0 : index
    %6 = vector.load %arg4[%c0_6, %c0_7] : memref<1x8xf32, #tpu.memory_space<vmem>>, vector<1x8xf32>
    %7 = vector.broadcast %6 : vector<1x8xf32> to vector<49x8xf32>
    %8 = arith.addf %5, %7 : vector<49x8xf32>
    %cst_8 = arith.constant 0.000000e+00 : f32
    %9 = vector.broadcast %cst_8 : f32 to vector<49x8xf32>
    %10 = arith.maximumf %8, %9 : vector<49x8xf32>
    %11 = vector.shape_cast %10 : vector<49x8xf32> to vector<7x7x8xf32>
    %c0_9 = arith.constant 0 : index
    %c0_10 = arith.constant 0 : index
    %c0_11 = arith.constant 0 : index
    %12 = vector.load %arg8[%c0_9, %c0_10, %c0_11] : memref<7x7x8xf32, #tpu.memory_space<vmem>>, vector<7x7x8xf32>
    tpu.vector_store %arg8[%c0_9, %c0_10, %c0_11], %11 {strides = array<i32>} : memref<7x7x8xf32, #tpu.memory_space<vmem>>, vector<7x7x8xf32>,
    %c0_12 = arith.constant 0 : index
    %c0_13 = arith.constant 0 : index
    %c0_14 = arith.constant 0 : index
    %13 = tpu.strided_load %arg8[%c0_12, %c0_13, %c0_14] {strides = array<i32: 2, 2, 1>} : memref<7x7x8xf32, #tpu.memory_space<vmem>>, vector<3x3x8xf32>
    %c0_15 = arith.constant 0 : index
    %c1 = arith.constant 1 : index
    %c0_16 = arith.constant 0 : index
    %14 = tpu.strided_load %arg8[%c0_15, %c1, %c0_16] {strides = array<i32: 2, 2, 1>} : memref<7x7x8xf32, #tpu.memory_space<vmem>>, vector<3x3x8xf32>
    %c0_17 = arith.constant 0 : index
    %c2 = arith.constant 2 : index
    %c0_18 = arith.constant 0 : index
    %15 = tpu.strided_load %arg8[%c0_17, %c2, %c0_18] {strides = array<i32: 2, 2, 1>} : memref<7x7x8xf32, #tpu.memory_space<vmem>>, vector<3x3x8xf32>
    %c1_19 = arith.constant 1 : index
    %c0_20 = arith.constant 0 : index
    %c0_21 = arith.constant 0 : index
    %16 = tpu.strided_load %arg8[%c1_19, %c0_20, %c0_21] {strides = array<i32: 2, 2, 1>} : memref<7x7x8xf32, #tpu.memory_space<vmem>>, vector<3x3x8xf32>
    %c1_22 = arith.constant 1 : index
    %c1_23 = arith.constant 1 : index
    %c0_24 = arith.constant 0 : index
    %17 = tpu.strided_load %arg8[%c1_22, %c1_23, %c0_24] {strides = array<i32: 2, 2, 1>} : memref<7x7x8xf32, #tpu.memory_space<vmem>>, vector<3x3x8xf32>
    %c1_25 = arith.constant 1 : index
    %c2_26 = arith.constant 2 : index
    %c0_27 = arith.constant 0 : index
    %18 = tpu.strided_load %arg8[%c1_25, %c2_26, %c0_27] {strides = array<i32: 2, 2, 1>} : memref<7x7x8xf32, #tpu.memory_space<vmem>>, vector<3x3x8xf32>
    %c2_28 = arith.constant 2 : index
    %c0_29 = arith.constant 0 : index
    %c0_30 = arith.constant 0 : index
    %19 = tpu.strided_load %arg8[%c2_28, %c0_29, %c0_30] {strides = array<i32: 2, 2, 1>} : memref<7x7x8xf32, #tpu.memory_space<vmem>>, vector<3x3x8xf32>
    %c2_31 = arith.constant 2 : index
    %c1_32 = arith.constant 1 : index
    %c0_33 = arith.constant 0 : index
    %20 = tpu.strided_load %arg8[%c2_31, %c1_32, %c0_33] {strides = array<i32: 2, 2, 1>} : memref<7x7x8xf32, #tpu.memory_space<vmem>>, vector<3x3x8xf32>
    %c2_34 = arith.constant 2 : index
    %c2_35 = arith.constant 2 : index
    %c0_36 = arith.constant 0 : index
    %21 = tpu.strided_load %arg8[%c2_34, %c2_35, %c0_36] {strides = array<i32: 2, 2, 1>} : memref<7x7x8xf32, #tpu.memory_space<vmem>>, vector<3x3x8xf32>
    %22 = tpu.concatenate %13, %14, %15, %16, %17, %18, %19, %20, %21 in 2 : vector<3x3x8xf32>, vector<3x3x8xf32>, vector<3x3x8xf32>, vector<3x3x8xf32>, vector<3x3x8xf32>, vector<3x3x8xf32>, vector<3x3x8xf32>, vector<3x3x8xf32>, vector<3x3x8xf32> -> vector<3x3x72xf32>
    %23 = vector.shape_cast %22 : vector<3x3x72xf32> to vector<9x72xf32>
    %24 = arith.truncf %23 : vector<9x72xf32> to vector<9x72xbf16>
    %c0_37 = arith.constant 0 : index
    %c0_38 = arith.constant 0 : index
    %25 = vector.load %arg5[%c0_37, %c0_38] : memref<72x8xbf16, #tpu.memory_space<vmem>>, vector<72x8xbf16>
    %cst_39 = arith.constant dense<0.000000e+00> : vector<9x8xf32>
    %26 = tpu.matmul %24, %25, %cst_39 {dimension_numbers = #tpu.dot_dimension_numbers<[1], [0], [0], [1], [0, 0, 1, 1], [], []>} : vector<9x72xbf16>, vector<72x8xbf16>, vector<9x8xf32> -> vector<9x8xf32>
    %c0_40 = arith.constant 0 : index
    %c0_41 = arith.constant 0 : index
    %27 = vector.load %arg6[%c0_40, %c0_41] : memref<1x8xf32, #tpu.memory_space<vmem>>, vector<1x8xf32>
    %28 = vector.broadcast %27 : vector<1x8xf32> to vector<9x8xf32>
    %29 = arith.addf %26, %28 : vector<9x8xf32>
    %cst_42 = arith.constant 0.000000e+00 : f32
    %30 = vector.broadcast %cst_42 : f32 to vector<9x8xf32>
    %31 = arith.maximumf %29, %30 : vector<9x8xf32>
    %32 = vector.shape_cast %31 : vector<9x8xf32> to vector<3x3x8xf32>
    %33 = tpu.transpose %32, [0, 2, 1] : vector<3x3x8xf32> -> vector<3x8x3xf32>
    %34 = vector.extract_strided_slice %33 {offsets = [0, 0, 0], sizes = [3, 1, 3], strides = [1, 1, 1]} : vector<3x8x3xf32> to vector<3x1x3xf32>
    %35 = vector.shape_cast %34 : vector<3x1x3xf32> to vector<3x3xf32>
    %36 = vector.extract_strided_slice %33 {offsets = [0, 1, 0], sizes = [3, 1, 3], strides = [1, 1, 1]} : vector<3x8x3xf32> to vector<3x1x3xf32>
    %37 = vector.shape_cast %36 : vector<3x1x3xf32> to vector<3x3xf32>
    %38 = vector.extract_strided_slice %33 {offsets = [0, 2, 0], sizes = [3, 1, 3], strides = [1, 1, 1]} : vector<3x8x3xf32> to vector<3x1x3xf32>
    %39 = vector.shape_cast %38 : vector<3x1x3xf32> to vector<3x3xf32>
    %40 = vector.extract_strided_slice %33 {offsets = [0, 3, 0], sizes = [3, 1, 3], strides = [1, 1, 1]} : vector<3x8x3xf32> to vector<3x1x3xf32>
    %41 = vector.shape_cast %40 : vector<3x1x3xf32> to vector<3x3xf32>
    %42 = vector.extract_strided_slice %33 {offsets = [0, 4, 0], sizes = [3, 1, 3], strides = [1, 1, 1]} : vector<3x8x3xf32> to vector<3x1x3xf32>
    %43 = vector.shape_cast %42 : vector<3x1x3xf32> to vector<3x3xf32>
    %44 = vector.extract_strided_slice %33 {offsets = [0, 5, 0], sizes = [3, 1, 3], strides = [1, 1, 1]} : vector<3x8x3xf32> to vector<3x1x3xf32>
    %45 = vector.shape_cast %44 : vector<3x1x3xf32> to vector<3x3xf32>
    %46 = vector.extract_strided_slice %33 {offsets = [0, 6, 0], sizes = [3, 1, 3], strides = [1, 1, 1]} : vector<3x8x3xf32> to vector<3x1x3xf32>
    %47 = vector.shape_cast %46 : vector<3x1x3xf32> to vector<3x3xf32>
    %48 = vector.extract_strided_slice %33 {offsets = [0, 7, 0], sizes = [3, 1, 3], strides = [1, 1, 1]} : vector<3x8x3xf32> to vector<3x1x3xf32>
    %49 = vector.shape_cast %48 : vector<3x1x3xf32> to vector<3x3xf32>
    %50 = tpu.concatenate %35, %37, %39, %41, %43, %45, %47, %49 in 1 : vector<3x3xf32>, vector<3x3xf32>, vector<3x3xf32>, vector<3x3xf32>, vector<3x3xf32>, vector<3x3xf32>, vector<3x3xf32>, vector<3x3xf32> -> vector<3x24xf32>
    %c0_43 = arith.constant 0 : index
    %c0_44 = arith.constant 0 : index
    %c0_45 = arith.constant 0 : index
    %51 = vector.load %arg7[%c0_43, %c0_44, %c0_45] : memref<1x3x24xf32, #tpu.memory_space<vmem>>, vector<1x3x24xf32>
    %52 = vector.shape_cast %51 : vector<1x3x24xf32> to vector<3x24xf32>
    %53 = vector.shape_cast %50 : vector<3x24xf32> to vector<1x3x24xf32>
    tpu.vector_store %arg7[%c0_43, %c0_44, %c0_45], %53 {strides = array<i32>} : memref<1x3x24xf32, #tpu.memory_space<vmem>>, vector<1x3x24xf32>,
    return
  }
  func.func @transform_0(%arg0: i32, %arg1: i32) -> (i32, i32, i32, i32, i32) {
    %c0_i32 = arith.constant 0 : i32
    %c0_i32_0 = arith.constant 0 : i32
    %c0_i32_1 = arith.constant 0 : i32
    %c0_i32_2 = arith.constant 0 : i32
    return %arg0, %arg1, %c0_i32, %c0_i32_0, %c0_i32_1 : i32, i32, i32, i32, i32
  }
  func.func @transform_1(%arg0: i32, %arg1: i32) -> (i32, i32) {
    %c0_i32 = arith.constant 0 : i32
    %c0_i32_0 = arith.constant 0 : i32
    %c0_i32_1 = arith.constant 0 : i32
    return %c0_i32, %c0_i32_0 : i32, i32
  }
  func.func @transform_2(%arg0: i32, %arg1: i32) -> (i32, i32) {
    %c0_i32 = arith.constant 0 : i32
    %c0_i32_0 = arith.constant 0 : i32
    %c0_i32_1 = arith.constant 0 : i32
    return %c0_i32, %c0_i32_0 : i32, i32
  }
  func.func @transform_3(%arg0: i32, %arg1: i32) -> (i32, i32) {
    %c0_i32 = arith.constant 0 : i32
    %c0_i32_0 = arith.constant 0 : i32
    %c0_i32_1 = arith.constant 0 : i32
    return %c0_i32, %c0_i32_0 : i32, i32
  }
  func.func @transform_4(%arg0: i32, %arg1: i32) -> (i32, i32) {
    %c0_i32 = arith.constant 0 : i32
    %c0_i32_0 = arith.constant 0 : i32
    %c0_i32_1 = arith.constant 0 : i32
    return %c0_i32, %c0_i32_0 : i32, i32
  }
  func.func @transform_5(%arg0: i32, %arg1: i32) -> (i32, i32, i32) {
    %c0_i32 = arith.constant 0 : i32
    %c0_i32_0 = arith.constant 0 : i32
    return %arg0, %arg1, %c0_i32 : i32, i32, i32
  }
}

</mosaic_0001>

<llo_original>
// kernel: tpu_custom_call.1
$region0: #{tpu_custom_call.1}
  #allocation0 [shape = 'u32[]', space=smem, size = 0x4, offset = 0x4, fixed_abs, tag = 'smem constant byte address 0x4 - core index']
  #allocation1 [shape = 'u32[144,128]{1,0:T(1,128)}', space=vmem, size = 0x12000, scoped, tag = 'internal scratch']
  #allocation2 [shape = 'f32[7,7,8]{2,1,0:T(8,128)}', space=vmem, size = 0x7000, scoped, tag = 'scratch operand']
  %s0 = inlined_call_operand.vmem [shape: f32[2,1,7,7,36], index: 0, kind: input, shape index: {}]
  %s1 = inlined_call_operand.vmem [shape: bf16[36,8], index: 1, kind: input, shape index: {}]
  %s2 = inlined_call_operand.vmem [shape: f32[1,8], index: 2, kind: input, shape index: {}]
  %s3 = inlined_call_operand.vmem [shape: bf16[72,8], index: 3, kind: input, shape index: {}]
  %s4 = inlined_call_operand.vmem [shape: f32[1,8], index: 4, kind: input, shape index: {}]
  %s5 = inlined_call_operand.vmem [shape: f32[2,3,24], index: 5, kind: output, shape index: {}]
  %s6 = sld [smem:[#allocation0]]
  $region53: #{tpu_custom_call.1} parent=0
    _
  %s8 = ssub.s32 1, %s6
  %s9 = scalar_select 0, %s8, %s6
  loop: start=0, step=1, limit=4
  $region2: #{tpu_custom_call.1} parent=0 // loop_pre_header
    _
  $region3: #{tpu_custom_call.1} parent=0 // loop_header
    %s11 = sphi 0, %s15
    %p12 = scmp.ge.s32.totalorder %s11, 4
    %s18 = sphi 0, %s30
    %s19 = sphi 0, %s26
    %s20 = sphi 0, %s18
    %s21 = sphi 0, %s19
    %s22 = sphi 0, %s20
    %s23 = sphi 0, %s21
    %s35 = sphi 0, %s37
    %s38 = sphi 0, %s35
    %s39 = sphi 0, %s38
    %s55 = sphi 0, %s39
    %s59 = sphi 0, %s59
    %s61 = sphi 0, %s59
    %s62 = sphi 0, %s61
    %s76 = sphi 0, %s62
    %s80 = sphi 0, %s80
    %s82 = sphi 0, %s80
    %s83 = sphi 0, %s82
    %s97 = sphi 0, %s83
    %s101 = sphi 0, %s101
    %s103 = sphi 0, %s101
    %s104 = sphi 0, %s103
    %s118 = sphi 0, %s104
    %s122 = sphi 0, %s122
    %s124 = sphi 0, %s122
    %s125 = sphi 0, %s124
    %s139 = sphi 0, %s125
    %s147 = sphi 0, %s149
    %s150 = sphi 0, %s147
    %s151 = sphi 0, %s150
    %s167 = sphi 0, %s151
  $region4: #{tpu_custom_call.1} parent=0 // loop_header_branch
    %14 = sbr.rel (%p12) target = $region8
  $region5: #{tpu_custom_call.1} parent=0 // loop_body
    %s16 = ssub.s32 %s11, 1
    %s17 = ssub.s32 %s11, 2
    %s24 = sadd.s32 1, %s19
    %p25 = scmp.ge.s32.totalorder %s24, 1
    %s26 = scalar_select %p25, 0, %s24
    %s27 = sadd.s32 1, %s18
    %s28 = scalar_select %p25, %s27, %s18
    %p29 = scmp.ge.s32.totalorder %s28, 2
    %s30 = scalar_select %p29, 0, %s28
    %s31 = ssub.s32 %s18, %s30
    %s32 = ssub.s32 %s19, %s26
    %s33 = sor.u32 %s31, %s32
    %p34 = scmp.eq.s32.totalorder %s33, 0
    %s36 = sadd.s32 %s35, 1
    %s37 = scalar_select %p34, %s35, %s36
    %p40 = pneg %p34
    %p41 = scmp.eq.s32.totalorder %s11, 1
    %p42 = por %p40, %p41
    %p43 = scmp.ne.s32.totalorder %s35, %s38
    %p44 = scmp.eq.s32.totalorder %s11, 0
    %p45 = por %p43, %p44
    %p46 = scmp.ne.s32.totalorder %s35, %s38
    %p47 = scmp.eq.s32.totalorder %s16, 1
    %p48 = por %p46, %p47
    %p49 = scmp.ne.s32.totalorder %s38, %s39
    %p50 = scmp.eq.s32.totalorder %s16, 0
    %p51 = por %p49, %p50
    %p52 = scmp.ne.s32.totalorder %s38, %s39
    %p53 = scmp.eq.s32.totalorder %s17, 1
    %p54 = por %p52, %p53
    %p56 = scmp.ne.s32.totalorder %s39, %s55
    %p57 = scmp.eq.s32.totalorder %s17, 0
    %p58 = por %p56, %p57
    %s60 = sadd.s32 %s59, 1
    %p63 = scmp.eq.s32.totalorder %s11, 1
    %p64 = scmp.ne.s32.totalorder %s59, %s61
    %p65 = scmp.eq.s32.totalorder %s11, 0
    %p66 = por %p64, %p65
    %p67 = scmp.ne.s32.totalorder %s59, %s61
    %p68 = scmp.eq.s32.totalorder %s16, 1
    %p69 = por %p67, %p68
    %p70 = scmp.ne.s32.totalorder %s61, %s62
    %p71 = scmp.eq.s32.totalorder %s16, 0
    %p72 = por %p70, %p71
    %p73 = scmp.ne.s32.totalorder %s61, %s62
    %p74 = scmp.eq.s32.totalorder %s17, 1
    %p75 = por %p73, %p74
    %p77 = scmp.ne.s32.totalorder %s62, %s76
    %p78 = scmp.eq.s32.totalorder %s17, 0
    %p79 = por %p77, %p78
    %s81 = sadd.s32 %s80, 1
    %p84 = scmp.eq.s32.totalorder %s11, 1
    %p85 = scmp.ne.s32.totalorder %s80, %s82
    %p86 = scmp.eq.s32.totalorder %s11, 0
    %p87 = por %p85, %p86
    %p88 = scmp.ne.s32.totalorder %s80, %s82
    %p89 = scmp.eq.s32.totalorder %s16, 1
    %p90 = por %p88, %p89
    %p91 = scmp.ne.s32.totalorder %s82, %s83
    %p92 = scmp.eq.s32.totalorder %s16, 0
    %p93 = por %p91, %p92
    %p94 = scmp.ne.s32.totalorder %s82, %s83
    %p95 = scmp.eq.s32.totalorder %s17, 1
    %p96 = por %p94, %p95
    %p98 = scmp.ne.s32.totalorder %s83, %s97
    %p99 = scmp.eq.s32.totalorder %s17, 0
    %p100 = por %p98, %p99
    %s102 = sadd.s32 %s101, 1
    %p105 = scmp.eq.s32.totalorder %s11, 1
    %p106 = scmp.ne.s32.totalorder %s101, %s103
    %p107 = scmp.eq.s32.totalorder %s11, 0
    %p108 = por %p106, %p107
    %p109 = scmp.ne.s32.totalorder %s101, %s103
    %p110 = scmp.eq.s32.totalorder %s16, 1
    %p111 = por %p109, %p110
    %p112 = scmp.ne.s32.totalorder %s103, %s104
    %p113 = scmp.eq.s32.totalorder %s16, 0
    %p114 = por %p112, %p113
    %p115 = scmp.ne.s32.totalorder %s103, %s104
    %p116 = scmp.eq.s32.totalorder %s17, 1
    %p117 = por %p115, %p116
    %p119 = scmp.ne.s32.totalorder %s104, %s118
    %p120 = scmp.eq.s32.totalorder %s17, 0
    %p121 = por %p119, %p120
    %s123 = sadd.s32 %s122, 1
    %p126 = scmp.eq.s32.totalorder %s11, 1
    %p127 = scmp.ne.s32.totalorder %s122, %s124
    %p128 = scmp.eq.s32.totalorder %s11, 0
    %p129 = por %p127, %p128
    %p130 = scmp.ne.s32.totalorder %s122, %s124
    %p131 = scmp.eq.s32.totalorder %s16, 1
    %p132 = por %p130, %p131
    %p133 = scmp.ne.s32.totalorder %s124, %s125
    %p134 = scmp.eq.s32.totalorder %s16, 0
    %p135 = por %p133, %p134
    %p136 = scmp.ne.s32.totalorder %s124, %s125
    %p137 = scmp.eq.s32.totalorder %s17, 1
    %p138 = por %p136, %p137
    %p140 = scmp.ne.s32.totalorder %s125, %s139
    %p141 = scmp.eq.s32.totalorder %s17, 0
    %p142 = por %p140, %p141
    %s143 = ssub.s32 %s18, %s30
    %s144 = ssub.s32 %s19, %s26
    %s145 = sor.u32 %s143, %s144
    %p146 = scmp.eq.s32.totalorder %s145, 0
    %s148 = sadd.s32 %s147, 1
    %s149 = scalar_select %p146, %s147, %s148
    %p152 = pneg %p146
    %p153 = scmp.eq.s32.totalorder %s11, 1
    %p154 = por %p152, %p153
    %p155 = scmp.ne.s32.totalorder %s147, %s150
    %p156 = scmp.eq.s32.totalorder %s11, 0
    %p157 = por %p155, %p156
    %p158 = scmp.ne.s32.totalorder %s147, %s150
    %p159 = scmp.eq.s32.totalorder %s16, 1
    %p160 = por %p158, %p159
    %p161 = scmp.ne.s32.totalorder %s150, %s151
    %p162 = scmp.eq.s32.totalorder %s16, 0
    %p163 = por %p161, %p162
    %p164 = scmp.ne.s32.totalorder %s150, %s151
    %p165 = scmp.eq.s32.totalorder %s17, 1
    %p166 = por %p164, %p165
    %p168 = scmp.ne.s32.totalorder %s151, %s167
    %p169 = scmp.eq.s32.totalorder %s17, 0
    %p170 = por %p168, %p169
    %p171 = scmp.le.s32.totalorder 1, %s11
    %p172 = scmp.lt.s32.totalorder %s11, 3
    %p173 = pnand %p171, %p172
    %p174 = pneg %p173
    // Predicated region
    $region9: #{tpu_custom_call.1} parent=5 // pred_check
      _
    $region10: #{tpu_custom_call.1} parent=5 // pred_check_branch
      %176 = sbr.rel (%p173) target = $region12
    $region11: #{tpu_custom_call.1} parent=5 // pred_region
      %s177 = ssub.s32 %s11, 1
      // Predicated region
      $region13: #{tpu_custom_call.1} parent=11 // pred_check
        %p178 = pneg %p72
      $region14: #{tpu_custom_call.1} parent=11 // pred_check_branch
        %180 = sbr.rel (%p178) target = $region16
      $region15: #{tpu_custom_call.1} parent=11 // pred_region
        _
      $region16: #{tpu_custom_call.1} parent=11 // pred_fallthru
        _
      // Predicated region
      $region17: #{tpu_custom_call.1} parent=11 // pred_check
        %p181 = pneg %p93
      $region18: #{tpu_custom_call.1} parent=11 // pred_check_branch
        %183 = sbr.rel (%p181) target = $region20
      $region19: #{tpu_custom_call.1} parent=11 // pred_region
        _
      $region20: #{tpu_custom_call.1} parent=11 // pred_fallthru
        _
      // Predicated region
      $region21: #{tpu_custom_call.1} parent=11 // pred_check
        %p184 = pneg %p114
      $region22: #{tpu_custom_call.1} parent=11 // pred_check_branch
        %186 = sbr.rel (%p184) target = $region24
      $region23: #{tpu_custom_call.1} parent=11 // pred_region
        _
      $region24: #{tpu_custom_call.1} parent=11 // pred_fallthru
        _
      // Predicated region
      $region25: #{tpu_custom_call.1} parent=11 // pred_check
        %p187 = pneg %p135
      $region26: #{tpu_custom_call.1} parent=11 // pred_check_branch
        %189 = sbr.rel (%p187) target = $region28
      $region27: #{tpu_custom_call.1} parent=11 // pred_region
        _
      $region28: #{tpu_custom_call.1} parent=11 // pred_fallthru
        _
    $region12: #{tpu_custom_call.1} parent=5 // pred_fallthru
      _
    %p190 = scmp.lt.s32.totalorder %s11, 2
    // Predicated region
    $region29: #{tpu_custom_call.1} parent=5 // pred_check
      %p191 = pneg %p190
    $region30: #{tpu_custom_call.1} parent=5 // pred_check_branch
      %193 = sbr.rel (%p191) target = $region32
    $region31: #{tpu_custom_call.1} parent=5 // pred_region
      // Predicated region
      $region33: #{tpu_custom_call.1} parent=31 // pred_check
        %p194 = pneg %p45
      $region34: #{tpu_custom_call.1} parent=31 // pred_check_branch
        %196 = sbr.rel (%p194) target = $region36
      $region35: #{tpu_custom_call.1} parent=31 // pred_region
        %p197 = scmp.lt.s32.totalorder %s18, 1
        %s198 = scalar_select %p197, %s18, 1
        %p199 = scmp.lt.s32.totalorder %s19, 0
        %s200 = scalar_select %p199, %s19, 0
        %s201 = smul.addr %s200, 7
        %s202 = smul.addr %s198, 7
        %s203 = sadd.s32 %s201, %s202
        %s204 = smul.addr %s203, 8
        %s205 = scalar_lea.vmem %s0, %s204
      $region36: #{tpu_custom_call.1} parent=31 // pred_fallthru
        _
    $region32: #{tpu_custom_call.1} parent=5 // pred_fallthru
      _
    %p206 = scmp.le.s32.totalorder 1, %s11
    %p207 = scmp.lt.s32.totalorder %s11, 3
    %p208 = pnand %p206, %p207
    %p209 = pneg %p208
    // Predicated region
    $region37: #{tpu_custom_call.1} parent=5 // pred_check
      _
    $region38: #{tpu_custom_call.1} parent=5 // pred_check_branch
      %211 = sbr.rel (%p208) target = $region40
    $region39: #{tpu_custom_call.1} parent=5 // pred_region
      %s212 = ssub.s32 %s11, 1
      %p213 = scmp.lt.s32.totalorder %s20, 1
      %s214 = scalar_select %p213, %s20, 1
      %p215 = scmp.lt.s32.totalorder %s21, 0
      %s216 = scalar_select %p215, %s21, 0
      %s217 = smul.addr %s216, 7
      %s218 = smul.addr %s214, 7
      %s219 = sadd.s32 %s217, %s218
      %s220 = smul.addr %s219, 8
      %s221 = scalar_lea.vmem %s0, %s220
      %p222 = pneg %p51
      %p223 = pneg %p48
      %p224 = pneg %p72
      %p225 = pneg %p69
      %p226 = pneg %p93
      %p227 = pneg %p90
      %p228 = pneg %p114
      %p229 = pneg %p111
      %p230 = pneg %p135
      %p231 = pneg %p132
      %p232 = pneg %p163
      %p233 = pneg %p160
      %p234 = scmp.lt.s32.totalorder %s20, 1
      %s235 = scalar_select %p234, %s20, 1
      %p236 = scmp.lt.s32.totalorder %s21, 0
      %s237 = scalar_select %p236, %s21, 0
      %s238 = sadd.s32 %s237, %s235
      %s239 = smul.addr %s238, 4
      %s240 = scalar_lea.vmem %s5, %s239
      %p241 = scmp.lt.s32.totalorder %s20, 1
      %s242 = scalar_select %p241, %s20, 1
      %p243 = scmp.lt.s32.totalorder %s21, 0
      %s244 = scalar_select %p243, %s21, 0
      %s245 = smul.addr %s244, 7
      %s246 = smul.addr %s242, 7
      %s247 = sadd.s32 %s245, %s246
      %s248 = smul.addr %s247, 8
      %s249 = scalar_lea.vmem %s0, %s248
      %p250 = scmp.lt.s32.totalorder %s20, 1
      %s251 = scalar_select %p250, %s20, 1
      %p252 = scmp.lt.s32.totalorder %s21, 0
      %s253 = scalar_select %p252, %s21, 0
      %s254 = sadd.s32 %s253, %s251
      %s255 = smul.addr %s254, 4
      %s256 = scalar_lea.vmem %s5, %s255
      %v258 = vld [vmem:[%s249] sm:$0x7f]
      %v259 = vld [vmem:[%s249 + $0x8] sm:$0x7f]
      %v260 = vld [vmem:[%s249 + $0x10] sm:$0x7f]
      %v261 = vld [vmem:[%s249 + $0x18] sm:$0x7f]
      %v262 = vld [vmem:[%s249 + $0x20] sm:$0x7f]
      %v263 = vld [vmem:[%s249 + $0x28] sm:$0x7f]
      %v264 = vld [vmem:[%s249 + $0x30] sm:$0x7f]
      %v272 = vcombine.high %v258, %v258
      %v274 = vunpack.c.l.s4 1966171168
      %v275 = vunpack.c.0.s8 %v274
      %v276 = vlaneseq
      %v277 = vshrl.u32 %v276, 7
      %v278 = vsub.s32 %v275, %v277
      %v279 = vrot.slane %v258, %v278
      %v281 = vunpack.c.l.s4 1966171168
      %v282 = vunpack.c.0.s8 %v281
      %v283 = vlaneseq
      %v284 = vshrl.u32 %v283, 7
      %v285 = vsub.s32 %v282, %v284
      %v286 = vrot.slane %v272, %v285
      %v287 = vcombine.high %v279, %v279
      %v288 = vcombine.high %v286, %v286
      %v290 = vunpack.c.l.s4 1966171168
      %v291 = vunpack.c.0.s8 %v290
      %v292 = vlaneseq
      %v293 = vshrl.u32 %v292, 7
      %v294 = vsub.s32 %v291, %v293
      %v295 = vrot.slane %v279, %v294
      %v297 = vunpack.c.l.s4 1966171168
      %v298 = vunpack.c.0.s8 %v297
      %v299 = vlaneseq
      %v300 = vshrl.u32 %v299, 7
      %v301 = vsub.s32 %v298, %v300
      %v302 = vrot.slane %v286, %v301
      %v304 = vunpack.c.l.s4 1966171168
      %v305 = vunpack.c.0.s8 %v304
      %v306 = vlaneseq
      %v307 = vshrl.u32 %v306, 7
      %v308 = vsub.s32 %v305, %v307
      %v309 = vrot.slane %v287, %v308
      %v311 = vunpack.c.l.s4 1966171168
      %v312 = vunpack.c.0.s8 %v311
      %v313 = vlaneseq
      %v314 = vshrl.u32 %v313, 7
      %v315 = vsub.s32 %v312, %v314
      %v316 = vrot.slane %v288, %v315
      %v317 = vcombine.high %v295, %v295
      %v318 = vcombine.high %v302, %v302
      %v319 = vcombine.high %v309, %v309
      %v320 = vcombine.high %v259, %v259
      %v322 = vunpack.c.l.s4 1966171168
      %v323 = vunpack.c.0.s8 %v322
      %v324 = vlaneseq
      %v325 = vshrl.u32 %v324, 7
      %v326 = vsub.s32 %v323, %v325
      %v327 = vrot.slane %v259, %v326
      %v329 = vunpack.c.l.s4 1966171168
      %v330 = vunpack.c.0.s8 %v329
      %v331 = vlaneseq
      %v332 = vshrl.u32 %v331, 7
      %v333 = vsub.s32 %v330, %v332
      %v334 = vrot.slane %v320, %v333
      %v335 = vcombine.high %v327, %v327
      %v336 = vcombine.high %v334, %v334
      %v338 = vunpack.c.l.s4 1966171168
      %v339 = vunpack.c.0.s8 %v338
      %v340 = vlaneseq
      %v341 = vshrl.u32 %v340, 7
      %v342 = vsub.s32 %v339, %v341
      %v343 = vrot.slane %v327, %v342
      %v345 = vunpack.c.l.s4 1966171168
      %v346 = vunpack.c.0.s8 %v345
      %v347 = vlaneseq
      %v348 = vshrl.u32 %v347, 7
      %v349 = vsub.s32 %v346, %v348
      %v350 = vrot.slane %v334, %v349
      %v352 = vunpack.c.l.s4 1966171168
      %v353 = vunpack.c.0.s8 %v352
      %v354 = vlaneseq
      %v355 = vshrl.u32 %v354, 7
      %v356 = vsub.s32 %v353, %v355
      %v357 = vrot.slane %v335, %v356
      %v359 = vunpack.c.l.s4 1966171168
      %v360 = vunpack.c.0.s8 %v359
      %v361 = vlaneseq
      %v362 = vshrl.u32 %v361, 7
      %v363 = vsub.s32 %v360, %v362
      %v364 = vrot.slane %v336, %v363
      %v365 = vcombine.high %v343, %v343
      %v366 = vcombine.high %v350, %v350
      %v367 = vcombine.high %v357, %v357
      %v368 = vcombine.high %v260, %v260
      %v370 = vunpack.c.l.s4 1966171168
      %v371 = vunpack.c.0.s8 %v370
      %v372 = vlaneseq
      %v373 = vshrl.u32 %v372, 7
      %v374 = vsub.s32 %v371, %v373
      %v375 = vrot.slane %v260, %v374
      %v377 = vunpack.c.l.s4 1966171168
      %v378 = vunpack.c.0.s8 %v377
      %v379 = vlaneseq
      %v380 = vshrl.u32 %v379, 7
      %v381 = vsub.s32 %v378, %v380
      %v382 = vrot.slane %v368, %v381
      %v383 = vcombine.high %v375, %v375
      %v384 = vcombine.high %v382, %v382
      %v386 = vunpack.c.l.s4 1966171168
      %v387 = vunpack.c.0.s8 %v386
      %v388 = vlaneseq
      %v389 = vshrl.u32 %v388, 7
      %v390 = vsub.s32 %v387, %v389
      %v391 = vrot.slane %v375, %v390
      %v393 = vunpack.c.l.s4 1966171168
      %v394 = vunpack.c.0.s8 %v393
      %v395 = vlaneseq
      %v396 = vshrl.u32 %v395, 7
      %v397 = vsub.s32 %v394, %v396
      %v398 = vrot.slane %v382, %v397
      %v400 = vunpack.c.l.s4 1966171168
      %v401 = vunpack.c.0.s8 %v400
      %v402 = vlaneseq
      %v403 = vshrl.u32 %v402, 7
      %v404 = vsub.s32 %v401, %v403
      %v405 = vrot.slane %v383, %v404
      %v407 = vunpack.c.l.s4 1966171168
      %v408 = vunpack.c.0.s8 %v407
      %v409 = vlaneseq
      %v410 = vshrl.u32 %v409, 7
      %v411 = vsub.s32 %v408, %v410
      %v412 = vrot.slane %v384, %v411
      %v413 = vcombine.high %v391, %v391
      %v414 = vcombine.high %v398, %v398
      %v415 = vcombine.high %v405, %v405
      %v416 = vcombine.high %v261, %v261
      %v418 = vunpack.c.l.s4 1966171168
      %v419 = vunpack.c.0.s8 %v418
      %v420 = vlaneseq
      %v421 = vshrl.u32 %v420, 7
      %v422 = vsub.s32 %v419, %v421
      %v423 = vrot.slane %v261, %v422
      %v425 = vunpack.c.l.s4 1966171168
      %v426 = vunpack.c.0.s8 %v425
      %v427 = vlaneseq
      %v428 = vshrl.u32 %v427, 7
      %v429 = vsub.s32 %v426, %v428
      %v430 = vrot.slane %v416, %v429
      %v431 = vcombine.high %v423, %v423
      %v432 = vcombine.high %v430, %v430
      %v434 = vunpack.c.l.s4 1966171168
      %v435 = vunpack.c.0.s8 %v434
      %v436 = vlaneseq
      %v437 = vshrl.u32 %v436, 7
      %v438 = vsub.s32 %v435, %v437
      %v439 = vrot.slane %v423, %v438
      %v441 = vunpack.c.l.s4 1966171168
      %v442 = vunpack.c.0.s8 %v441
      %v443 = vlaneseq
      %v444 = vshrl.u32 %v443, 7
      %v445 = vsub.s32 %v442, %v444
      %v446 = vrot.slane %v430, %v445
      %v448 = vunpack.c.l.s4 1966171168
      %v449 = vunpack.c.0.s8 %v448
      %v450 = vlaneseq
      %v451 = vshrl.u32 %v450, 7
      %v452 = vsub.s32 %v449, %v451
      %v453 = vrot.slane %v431, %v452
      %v455 = vunpack.c.l.s4 1966171168
      %v456 = vunpack.c.0.s8 %v455
      %v457 = vlaneseq
      %v458 = vshrl.u32 %v457, 7
      %v459 = vsub.s32 %v456, %v458
      %v460 = vrot.slane %v432, %v459
      %v461 = vcombine.high %v439, %v439
      %v462 = vcombine.high %v446, %v446
      %v463 = vcombine.high %v453, %v453
      %v464 = vcombine.high %v262, %v262
      %v466 = vunpack.c.l.s4 1966171168
      %v467 = vunpack.c.0.s8 %v466
      %v468 = vlaneseq
      %v469 = vshrl.u32 %v468, 7
      %v470 = vsub.s32 %v467, %v469
      %v471 = vrot.slane %v262, %v470
      %v473 = vunpack.c.l.s4 1966171168
      %v474 = vunpack.c.0.s8 %v473
      %v475 = vlaneseq
      %v476 = vshrl.u32 %v475, 7
      %v477 = vsub.s32 %v474, %v476
      %v478 = vrot.slane %v464, %v477
      %v479 = vcombine.high %v471, %v471
      %v480 = vcombine.high %v478, %v478
      %v482 = vunpack.c.l.s4 1966171168
      %v483 = vunpack.c.0.s8 %v482
      %v484 = vlaneseq
      %v485 = vshrl.u32 %v484, 7
      %v486 = vsub.s32 %v483, %v485
      %v487 = vrot.slane %v471, %v486
      %v489 = vunpack.c.l.s4 1966171168
      %v490 = vunpack.c.0.s8 %v489
      %v491 = vlaneseq
      %v492 = vshrl.u32 %v491, 7
      %v493 = vsub.s32 %v490, %v492
      %v494 = vrot.slane %v478, %v493
      %v496 = vunpack.c.l.s4 1966171168
      %v497 = vunpack.c.0.s8 %v496
      %v498 = vlaneseq
      %v499 = vshrl.u32 %v498, 7
      %v500 = vsub.s32 %v497, %v499
      %v501 = vrot.slane %v479, %v500
      %v503 = vunpack.c.l.s4 1966171168
      %v504 = vunpack.c.0.s8 %v503
      %v505 = vlaneseq
      %v506 = vshrl.u32 %v505, 7
      %v507 = vsub.s32 %v504, %v506
      %v508 = vrot.slane %v480, %v507
      %v509 = vcombine.high %v487, %v487
      %v510 = vcombine.high %v494, %v494
      %v511 = vcombine.high %v501, %v501
      %v512 = vcombine.high %v263, %v263
      %v514 = vunpack.c.l.s4 1966171168
      %v515 = vunpack.c.0.s8 %v514
      %v516 = vlaneseq
      %v517 = vshrl.u32 %v516, 7
      %v518 = vsub.s32 %v515, %v517
      %v519 = vrot.slane %v263, %v518
      %v521 = vunpack.c.l.s4 1966171168
      %v522 = vunpack.c.0.s8 %v521
      %v523 = vlaneseq
      %v524 = vshrl.u32 %v523, 7
      %v525 = vsub.s32 %v522, %v524
      %v526 = vrot.slane %v512, %v525
      %v527 = vcombine.high %v519, %v519
      %v528 = vcombine.high %v526, %v526
      %v530 = vunpack.c.l.s4 1966171168
      %v531 = vunpack.c.0.s8 %v530
      %v532 = vlaneseq
      %v533 = vshrl.u32 %v532, 7
      %v534 = vsub.s32 %v531, %v533
      %v535 = vrot.slane %v519, %v534
      %v537 = vunpack.c.l.s4 1966171168
      %v538 = vunpack.c.0.s8 %v537
      %v539 = vlaneseq
      %v540 = vshrl.u32 %v539, 7
      %v541 = vsub.s32 %v538, %v540
      %v542 = vrot.slane %v526, %v541
      %v544 = vunpack.c.l.s4 1966171168
      %v545 = vunpack.c.0.s8 %v544
      %v546 = vlaneseq
      %v547 = vshrl.u32 %v546, 7
      %v548 = vsub.s32 %v545, %v547
      %v549 = vrot.slane %v527, %v548
      %v551 = vunpack.c.l.s4 1966171168
      %v552 = vunpack.c.0.s8 %v551
      %v553 = vlaneseq
      %v554 = vshrl.u32 %v553, 7
      %v555 = vsub.s32 %v552, %v554
      %v556 = vrot.slane %v528, %v555
      %v557 = vcombine.high %v535, %v535
      %v558 = vcombine.high %v542, %v542
      %v559 = vcombine.high %v549, %v549
      %v560 = vcombine.high %v264, %v264
      %v562 = vunpack.c.l.s4 1966171168
      %v563 = vunpack.c.0.s8 %v562
      %v564 = vlaneseq
      %v565 = vshrl.u32 %v564, 7
      %v566 = vsub.s32 %v563, %v565
      %v567 = vrot.slane %v264, %v566
      %v569 = vunpack.c.l.s4 1966171168
      %v570 = vunpack.c.0.s8 %v569
      %v571 = vlaneseq
      %v572 = vshrl.u32 %v571, 7
      %v573 = vsub.s32 %v570, %v572
      %v574 = vrot.slane %v560, %v573
      %v575 = vcombine.high %v567, %v567
      %v576 = vcombine.high %v574, %v574
      %v578 = vunpack.c.l.s4 1966171168
      %v579 = vunpack.c.0.s8 %v578
      %v580 = vlaneseq
      %v581 = vshrl.u32 %v580, 7
      %v582 = vsub.s32 %v579, %v581
      %v583 = vrot.slane %v567, %v582
      %v585 = vunpack.c.l.s4 1966171168
      %v586 = vunpack.c.0.s8 %v585
      %v587 = vlaneseq
      %v588 = vshrl.u32 %v587, 7
      %v589 = vsub.s32 %v586, %v588
      %v590 = vrot.slane %v574, %v589
      %v592 = vunpack.c.l.s4 1966171168
      %v593 = vunpack.c.0.s8 %v592
      %v594 = vlaneseq
      %v595 = vshrl.u32 %v594, 7
      %v596 = vsub.s32 %v593, %v595
      %v597 = vrot.slane %v575, %v596
      %v599 = vunpack.c.l.s4 1966171168
      %v600 = vunpack.c.0.s8 %v599
      %v601 = vlaneseq
      %v602 = vshrl.u32 %v601, 7
      %v603 = vsub.s32 %v600, %v602
      %v604 = vrot.slane %v576, %v603
      %v605 = vcombine.high %v583, %v583
      %v606 = vcombine.high %v590, %v590
      %v607 = vcombine.high %v597, %v597
      %v608 = vcombine.low %v295, %v309
      %v609 = vcombine.low %v317, %v319
      %v610 = vcombine.low %v302, %v316
      %v611 = vcombine.low %v318, %v343
      %v613 = vunpack.c.l.s4 1966171168
      %v614 = vunpack.c.0.s8 %v613
      %v615 = vlaneseq
      %v616 = vshrl.u32 %v615, 7
      %v617 = vsub.s32 %v614, %v616
      %v618 = vrot.slane %v608, %v617
      %v620 = vunpack.c.l.s4 1966171168
      %v621 = vunpack.c.0.s8 %v620
      %v622 = vlaneseq
      %v623 = vshrl.u32 %v622, 7
      %v624 = vsub.s32 %v621, %v623
      %v625 = vrot.slane %v609, %v624
      %v627 = vunpack.c.l.s4 1966171168
      %v628 = vunpack.c.0.s8 %v627
      %v629 = vlaneseq
      %v630 = vshrl.u32 %v629, 7
      %v631 = vsub.s32 %v628, %v630
      %v632 = vrot.slane %v610, %v631
      %v634 = vunpack.c.l.s4 1966171168
      %v635 = vunpack.c.0.s8 %v634
      %v636 = vlaneseq
      %v637 = vshrl.u32 %v636, 7
      %v638 = vsub.s32 %v635, %v637
      %v639 = vrot.slane %v611, %v638
      %v640 = vcombine.low %v618, %v625
      %v641 = vcombine.low %v632, %v639
      %v643 = vunpack.c.l.s4 1966171168
      %v644 = vunpack.c.0.s8 %v643
      %v645 = vlaneseq
      %v646 = vshrl.u32 %v645, 7
      %v647 = vsub.s32 %v644, %v646
      %v648 = vrot.slane %v640, %v647
      %v650 = vunpack.c.l.s4 1966171168
      %v651 = vunpack.c.0.s8 %v650
      %v652 = vlaneseq
      %v653 = vshrl.u32 %v652, 7
      %v654 = vsub.s32 %v651, %v653
      %v655 = vrot.slane %v641, %v654
      %v656 = vcombine.low %v648, %v655
      %v657 = vcombine.low %v357, %v365
      %v658 = vcombine.low %v367, %v350
      %v659 = vcombine.low %v364, %v366
      %v660 = vcombine.low %v391, %v405
      %v662 = vunpack.c.l.s4 1966171168
      %v663 = vunpack.c.0.s8 %v662
      %v664 = vlaneseq
      %v665 = vshrl.u32 %v664, 7
      %v666 = vsub.s32 %v663, %v665
      %v667 = vrot.slane %v657, %v666
      %v669 = vunpack.c.l.s4 1966171168
      %v670 = vunpack.c.0.s8 %v669
      %v671 = vlaneseq
      %v672 = vshrl.u32 %v671, 7
      %v673 = vsub.s32 %v670, %v672
      %v674 = vrot.slane %v658, %v673
      %v676 = vunpack.c.l.s4 1966171168
      %v677 = vunpack.c.0.s8 %v676
      %v678 = vlaneseq
      %v679 = vshrl.u32 %v678, 7
      %v680 = vsub.s32 %v677, %v679
      %v681 = vrot.slane %v659, %v680
      %v683 = vunpack.c.l.s4 1966171168
      %v684 = vunpack.c.0.s8 %v683
      %v685 = vlaneseq
      %v686 = vshrl.u32 %v685, 7
      %v687 = vsub.s32 %v684, %v686
      %v688 = vrot.slane %v660, %v687
      %v689 = vcombine.low %v667, %v674
      %v690 = vcombine.low %v681, %v688
      %v692 = vunpack.c.l.s4 1966171168
      %v693 = vunpack.c.0.s8 %v692
      %v694 = vlaneseq
      %v695 = vshrl.u32 %v694, 7
      %v696 = vsub.s32 %v693, %v695
      %v697 = vrot.slane %v689, %v696
      %v699 = vunpack.c.l.s4 1966171168
      %v700 = vunpack.c.0.s8 %v699
      %v701 = vlaneseq
      %v702 = vshrl.u32 %v701, 7
      %v703 = vsub.s32 %v700, %v702
      %v704 = vrot.slane %v690, %v703
      %v705 = vcombine.low %v697, %v704
      %v706 = vcombine.low %v413, %v415
      %v707 = vcombine.low %v398, %v412
      %v708 = vcombine.low %v414, %v439
      %v709 = vcombine.low %v453, %v461
      %v711 = vunpack.c.l.s4 1966171168
      %v712 = vunpack.c.0.s8 %v711
      %v713 = vlaneseq
      %v714 = vshrl.u32 %v713, 7
      %v715 = vsub.s32 %v712, %v714
      %v716 = vrot.slane %v706, %v715
      %v718 = vunpack.c.l.s4 1966171168
      %v719 = vunpack.c.0.s8 %v718
      %v720 = vlaneseq
      %v721 = vshrl.u32 %v720, 7
      %v722 = vsub.s32 %v719, %v721
      %v723 = vrot.slane %v707, %v722
      %v725 = vunpack.c.l.s4 1966171168
      %v726 = vunpack.c.0.s8 %v725
      %v727 = vlaneseq
      %v728 = vshrl.u32 %v727, 7
      %v729 = vsub.s32 %v726, %v728
      %v730 = vrot.slane %v708, %v729
      %v732 = vunpack.c.l.s4 1966171168
      %v733 = vunpack.c.0.s8 %v732
      %v734 = vlaneseq
      %v735 = vshrl.u32 %v734, 7
      %v736 = vsub.s32 %v733, %v735
      %v737 = vrot.slane %v709, %v736
      %v738 = vcombine.low %v716, %v723
      %v739 = vcombine.low %v730, %v737
      %v741 = vunpack.c.l.s4 1966171168
      %v742 = vunpack.c.0.s8 %v741
      %v743 = vlaneseq
      %v744 = vshrl.u32 %v743, 7
      %v745 = vsub.s32 %v742, %v744
      %v746 = vrot.slane %v738, %v745
      %v748 = vunpack.c.l.s4 1966171168
      %v749 = vunpack.c.0.s8 %v748
      %v750 = vlaneseq
      %v751 = vshrl.u32 %v750, 7
      %v752 = vsub.s32 %v749, %v751
      %v753 = vrot.slane %v739, %v752
      %v754 = vcombine.low %v746, %v753
      %v755 = vcombine.low %v463, %v446
      %v756 = vcombine.low %v460, %v462
      %v757 = vcombine.low %v487, %v501
      %v758 = vcombine.low %v509, %v511
      %v760 = vunpack.c.l.s4 1966171168
      %v761 = vunpack.c.0.s8 %v760
      %v762 = vlaneseq
      %v763 = vshrl.u32 %v762, 7
      %v764 = vsub.s32 %v761, %v763
      %v765 = vrot.slane %v755, %v764
      %v767 = vunpack.c.l.s4 1966171168
      %v768 = vunpack.c.0.s8 %v767
      %v769 = vlaneseq
      %v770 = vshrl.u32 %v769, 7
      %v771 = vsub.s32 %v768, %v770
      %v772 = vrot.slane %v756, %v771
      %v774 = vunpack.c.l.s4 1966171168
      %v775 = vunpack.c.0.s8 %v774
      %v776 = vlaneseq
      %v777 = vshrl.u32 %v776, 7
      %v778 = vsub.s32 %v775, %v777
      %v779 = vrot.slane %v757, %v778
      %v781 = vunpack.c.l.s4 1966171168
      %v782 = vunpack.c.0.s8 %v781
      %v783 = vlaneseq
      %v784 = vshrl.u32 %v783, 7
      %v785 = vsub.s32 %v782, %v784
      %v786 = vrot.slane %v758, %v785
      %v787 = vcombine.low %v765, %v772
      %v788 = vcombine.low %v779, %v786
      %v790 = vunpack.c.l.s4 1966171168
      %v791 = vunpack.c.0.s8 %v790
      %v792 = vlaneseq
      %v793 = vshrl.u32 %v792, 7
      %v794 = vsub.s32 %v791, %v793
      %v795 = vrot.slane %v787, %v794
      %v797 = vunpack.c.l.s4 1966171168
      %v798 = vunpack.c.0.s8 %v797
      %v799 = vlaneseq
      %v800 = vshrl.u32 %v799, 7
      %v801 = vsub.s32 %v798, %v800
      %v802 = vrot.slane %v788, %v801
      %v803 = vcombine.low %v795, %v802
      %v804 = vcombine.low %v494, %v508
      %v805 = vcombine.low %v510, %v535
      %v806 = vcombine.low %v549, %v557
      %v807 = vcombine.low %v559, %v542
      %v809 = vunpack.c.l.s4 1966171168
      %v810 = vunpack.c.0.s8 %v809
      %v811 = vlaneseq
      %v812 = vshrl.u32 %v811, 7
      %v813 = vsub.s32 %v810, %v812
      %v814 = vrot.slane %v804, %v813
      %v816 = vunpack.c.l.s4 1966171168
      %v817 = vunpack.c.0.s8 %v816
      %v818 = vlaneseq
      %v819 = vshrl.u32 %v818, 7
      %v820 = vsub.s32 %v817, %v819
      %v821 = vrot.slane %v805, %v820
      %v823 = vunpack.c.l.s4 1966171168
      %v824 = vunpack.c.0.s8 %v823
      %v825 = vlaneseq
      %v826 = vshrl.u32 %v825, 7
      %v827 = vsub.s32 %v824, %v826
      %v828 = vrot.slane %v806, %v827
      %v830 = vunpack.c.l.s4 1966171168
      %v831 = vunpack.c.0.s8 %v830
      %v832 = vlaneseq
      %v833 = vshrl.u32 %v832, 7
      %v834 = vsub.s32 %v831, %v833
      %v835 = vrot.slane %v807, %v834
      %v836 = vcombine.low %v814, %v821
      %v837 = vcombine.low %v828, %v835
      %v839 = vunpack.c.l.s4 1966171168
      %v840 = vunpack.c.0.s8 %v839
      %v841 = vlaneseq
      %v842 = vshrl.u32 %v841, 7
      %v843 = vsub.s32 %v840, %v842
      %v844 = vrot.slane %v836, %v843
      %v846 = vunpack.c.l.s4 1966171168
      %v847 = vunpack.c.0.s8 %v846
      %v848 = vlaneseq
      %v849 = vshrl.u32 %v848, 7
      %v850 = vsub.s32 %v847, %v849
      %v851 = vrot.slane %v837, %v850
      %v852 = vcombine.low %v844, %v851
      %v853 = vcombine.low %v556, %v558
      %v854 = vcombine.low %v583, %v597
      %v855 = vcombine.low %v605, %v607
      %v856 = vcombine.low %v590, %v604
      %v858 = vunpack.c.l.s4 1966171168
      %v859 = vunpack.c.0.s8 %v858
      %v860 = vlaneseq
      %v861 = vshrl.u32 %v860, 7
      %v862 = vsub.s32 %v859, %v861
      %v863 = vrot.slane %v853, %v862
      %v865 = vunpack.c.l.s4 1966171168
      %v866 = vunpack.c.0.s8 %v865
      %v867 = vlaneseq
      %v868 = vshrl.u32 %v867, 7
      %v869 = vsub.s32 %v866, %v868
      %v870 = vrot.slane %v854, %v869
      %v872 = vunpack.c.l.s4 1966171168
      %v873 = vunpack.c.0.s8 %v872
      %v874 = vlaneseq
      %v875 = vshrl.u32 %v874, 7
      %v876 = vsub.s32 %v873, %v875
      %v877 = vrot.slane %v855, %v876
      %v879 = vunpack.c.l.s4 1966171168
      %v880 = vunpack.c.0.s8 %v879
      %v881 = vlaneseq
      %v882 = vshrl.u32 %v881, 7
      %v883 = vsub.s32 %v880, %v882
      %v884 = vrot.slane %v856, %v883
      %v885 = vcombine.low %v863, %v870
      %v886 = vcombine.low %v877, %v884
      %v888 = vunpack.c.l.s4 1966171168
      %v889 = vunpack.c.0.s8 %v888
      %v890 = vlaneseq
      %v891 = vshrl.u32 %v890, 7
      %v892 = vsub.s32 %v889, %v891
      %v893 = vrot.slane %v885, %v892
      %v895 = vunpack.c.l.s4 1966171168
      %v896 = vunpack.c.0.s8 %v895
      %v897 = vlaneseq
      %v898 = vshrl.u32 %v897, 7
      %v899 = vsub.s32 %v896, %v898
      %v900 = vrot.slane %v886, %v899
      %v901 = vcombine.low %v893, %v900
      %v903 = vunpack.c.l.s4 1966171168
      %v904 = vunpack.c.0.s8 %v903
      %v905 = vlaneseq
      %v906 = vshrl.u32 %v905, 7
      %v907 = vsub.s32 %v904, %v906
      %v908 = vrot.slane %v606, %v907
      %v910 = vunpack.c.l.s4 1966171168
      %v911 = vunpack.c.0.s8 %v910
      %v912 = vlaneseq
      %v913 = vshrl.u32 %v912, 7
      %v914 = vsub.s32 %v911, %v913
      %v915 = vrot.slane %v908, %v914
      %v923 = vpack.c.bf16 %v705, %v656
      %v924 = vpack.c.bf16 %v803, %v754
      %v925 = vpack.c.bf16 %v901, %v852
      %v926 = vpack.c.bf16 %v915, %v915
      %v927 = vld [vmem:[%s1] sm:$0xf]
      %v928 = vld [vmem:[%s1 + $0x4] sm:$0xf]
      %v929 = vld [vmem:[%s1 + $0x8] sm:$0xf]
      %v930 = vld [vmem:[%s1 + $0xc] sm:$0xf]
      %v931 = vld [vmem:[%s1 + $0x10] sm:$0x3]
      %v932 = vld [vmem:[%s2] sm:$0x1]
      %v934 = vlaneseq
      %v935 = vshrl.u32 %v934, 7
      %v936 = vsub.s32 0, %v935
      %v937 = vrot.slane %v932, %v936
      %v944 = vunpack.c.l.b16 %v927
      %v945 = vunpack.c.l.b16 %v928
      %v946 = vunpack.c.l.b16 %v929
      %v947 = vunpack.c.l.b16 %v930
      %v948 = vunpack.c.l.b16 %v931
      %v949 = vpack.c.b16 %v945, %v944
      %v950 = vpack.c.b16 %v947, %v946
      %v951 = vpack.c.b16 %v948, %v948
      %vm954 = vcmask 293888
      %v956 = vsel %vm954, %v923, 0
      %v959 = vsel %vm954, %v924, 0
      %v962 = vsel %vm954, %v925, 0
      %v965 = vsel %vm954, %v926, 0
      %vm967 = vcmask 1041408
      %v969 = vsel %vm967, %v951, 0
      %971 = vmatprep.subr.bf16.mxu0 0
      %972 = vmatpush1.bf16.msra.mxu0 %v949
      %973 = vmatprep.subr.bf16.mxu0 0
      %974 = vmatpush1.bf16.msra.mxu0 %v950
      %975 = vmatprep.subr.bf16.mxu0 0
      %976 = vmatpush1.bf16.msra.mxu0 %v969
      %977 = vmatprep.subr.bf16.mxu0 0
      %978 = vmatpush1.bf16.msra.mxu0 0
      %979 = vmatprep.subr.bf16.mxu0 0
      %980 = vmatpush1.bf16.msra.mxu0 0
      %981 = vmatprep.subr.bf16.mxu0 0
      %982 = vmatpush1.bf16.msra.mxu0 0
      %983 = vmatprep.subr.bf16.mxu0 0
      %984 = vmatpush1.bf16.msra.mxu0 0
      %985 = vmatprep.subr.bf16.mxu0 0
      %986 = vmatpush1.bf16.msra.mxu0 0
      %987 = vmatprep.subr.bf16.mxu0 0
      %988 = vmatpush1.bf16.msra.mxu0 0
      %989 = vmatprep.subr.bf16.mxu0 0
      %990 = vmatpush1.bf16.msra.mxu0 0
      %991 = vmatprep.subr.bf16.mxu0 0
      %992 = vmatpush1.bf16.msra.mxu0 0
      %993 = vmatprep.subr.bf16.mxu0 0
      %994 = vmatpush1.bf16.msra.mxu0 0
      %995 = vmatprep.subr.bf16.mxu0 0
      %996 = vmatpush1.bf16.msra.mxu0 0
      %997 = vmatprep.subr.bf16.mxu0 0
      %998 = vmatpush1.bf16.msra.mxu0 0
      %999 = vmatprep.subr.bf16.mxu0 0
      %1000 = vmatpush1.bf16.msra.mxu0 0
      %1001 = vmatprep.subr.bf16.mxu0 0
      %1002 = vmatpush1.bf16.msra.mxu0 0
      %1003 = vmatprep.mubr.bf16.mxu0 0
      %1004 = vmatmul.mubr.bf16.gmra.mrb[0].mxu0 %v956
      %v1005 = vpop.f32.mrb[0].mxu0
      %v1006 = vadd.f32 %v937, %v1005
      %v1007 = vpop.f32.mrb[0].mxu0
      %v1008 = vpop.f32.mrb[0].mxu0
      %v1009 = vadd.f32 %v937, %v1008
      %v1010 = vpop.f32.mrb[0].mxu0
      %1011 = vmatprep.mubr.bf16.mxu0 0
      %1012 = vmatmul.mubr.bf16.gmra.mrb[0].mxu0 %v959
      %v1013 = vpop.f32.mrb[0].mxu0
      %v1014 = vadd.f32 %v937, %v1013
      %v1015 = vpop.f32.mrb[0].mxu0
      %v1016 = vpop.f32.mrb[0].mxu0
      %v1017 = vadd.f32 %v937, %v1016
      %v1018 = vpop.f32.mrb[0].mxu0
      %1019 = vmatprep.mubr.bf16.mxu0 0
      %1020 = vmatmul.mubr.bf16.gmra.mrb[0].mxu0 %v962
      %v1021 = vpop.f32.mrb[0].mxu0
      %v1022 = vadd.f32 %v937, %v1021
      %v1023 = vpop.f32.mrb[0].mxu0
      %v1024 = vpop.f32.mrb[0].mxu0
      %v1025 = vadd.f32 %v937, %v1024
      %v1026 = vpop.f32.mrb[0].mxu0
      %1027 = vmatprep.mubr.bf16.mxu0 0
      %1028 = vmatmul.mubr.bf16.gmra.mrb[0].mxu0 %v965
      %v1029 = vpop.f32.mrb[0].mxu0
      %v1030 = vadd.f32 %v937, %v1029
      %v1031 = vpop.f32.mrb[0].mxu0
      %v1032 = vpop.f32.mrb[0].mxu0
      %v1033 = vpop.f32.mrb[0].mxu0
      %1034 = vdwg.mxu0
      %v1035 = vmax.f32 %v1006, 0.0
      %v1036 = vmax.f32 %v1009, 0.0
      %v1037 = vmax.f32 %v1014, 0.0
      %v1038 = vmax.f32 %v1017, 0.0
      %v1039 = vmax.f32 %v1022, 0.0
      %v1040 = vmax.f32 %v1025, 0.0
      %v1041 = vmax.f32 %v1030, 0.0
      %v1049 = vcombine.high %v1035, %v1035
      %v1051 = vunpack.c.l.s4 1966171168
      %v1052 = vunpack.c.0.s8 %v1051
      %v1053 = vlaneseq
      %v1054 = vshrl.u32 %v1053, 7
      %v1055 = vsub.s32 %v1052, %v1054
      %v1056 = vrot.slane %v1035, %v1055
      %v1058 = vunpack.c.l.s4 1966171168
      %v1059 = vunpack.c.0.s8 %v1058
      %v1060 = vlaneseq
      %v1061 = vshrl.u32 %v1060, 7
      %v1062 = vsub.s32 %v1059, %v1061
      %v1063 = vrot.slane %v1049, %v1062
      %v1064 = vcombine.high %v1056, %v1056
      %v1065 = vcombine.high %v1063, %v1063
      %v1067 = vunpack.c.l.s4 1966171168
      %v1068 = vunpack.c.0.s8 %v1067
      %v1069 = vlaneseq
      %v1070 = vshrl.u32 %v1069, 7
      %v1071 = vsub.s32 %v1068, %v1070
      %v1072 = vrot.slane %v1056, %v1071
      %v1074 = vunpack.c.l.s4 1966171168
      %v1075 = vunpack.c.0.s8 %v1074
      %v1076 = vlaneseq
      %v1077 = vshrl.u32 %v1076, 7
      %v1078 = vsub.s32 %v1075, %v1077
      %v1079 = vrot.slane %v1063, %v1078
      %v1081 = vunpack.c.l.s4 1966171168
      %v1082 = vunpack.c.0.s8 %v1081
      %v1083 = vlaneseq
      %v1084 = vshrl.u32 %v1083, 7
      %v1085 = vsub.s32 %v1082, %v1084
      %v1086 = vrot.slane %v1064, %v1085
      %v1088 = vunpack.c.l.s4 1966171168
      %v1089 = vunpack.c.0.s8 %v1088
      %v1090 = vlaneseq
      %v1091 = vshrl.u32 %v1090, 7
      %v1092 = vsub.s32 %v1089, %v1091
      %v1093 = vrot.slane %v1065, %v1092
      %v1094 = vcombine.high %v1072, %v1072
      %v1095 = vcombine.high %v1079, %v1079
      %v1096 = vcombine.high %v1086, %v1086
      %v1097 = vcombine.high %v1093, %v1093
      %v1098 = vcombine.high %v1036, %v1036
      %v1100 = vunpack.c.l.s4 1966171168
      %v1101 = vunpack.c.0.s8 %v1100
      %v1102 = vlaneseq
      %v1103 = vshrl.u32 %v1102, 7
      %v1104 = vsub.s32 %v1101, %v1103
      %v1105 = vrot.slane %v1036, %v1104
      %v1107 = vunpack.c.l.s4 1966171168
      %v1108 = vunpack.c.0.s8 %v1107
      %v1109 = vlaneseq
      %v1110 = vshrl.u32 %v1109, 7
      %v1111 = vsub.s32 %v1108, %v1110
      %v1112 = vrot.slane %v1098, %v1111
      %v1113 = vcombine.high %v1105, %v1105
      %v1114 = vcombine.high %v1112, %v1112
      %v1116 = vunpack.c.l.s4 1966171168
      %v1117 = vunpack.c.0.s8 %v1116
      %v1118 = vlaneseq
      %v1119 = vshrl.u32 %v1118, 7
      %v1120 = vsub.s32 %v1117, %v1119
      %v1121 = vrot.slane %v1105, %v1120
      %v1123 = vunpack.c.l.s4 1966171168
      %v1124 = vunpack.c.0.s8 %v1123
      %v1125 = vlaneseq
      %v1126 = vshrl.u32 %v1125, 7
      %v1127 = vsub.s32 %v1124, %v1126
      %v1128 = vrot.slane %v1112, %v1127
      %v1130 = vunpack.c.l.s4 1966171168
      %v1131 = vunpack.c.0.s8 %v1130
      %v1132 = vlaneseq
      %v1133 = vshrl.u32 %v1132, 7
      %v1134 = vsub.s32 %v1131, %v1133
      %v1135 = vrot.slane %v1113, %v1134
      %v1137 = vunpack.c.l.s4 1966171168
      %v1138 = vunpack.c.0.s8 %v1137
      %v1139 = vlaneseq
      %v1140 = vshrl.u32 %v1139, 7
      %v1141 = vsub.s32 %v1138, %v1140
      %v1142 = vrot.slane %v1114, %v1141
      %v1143 = vcombine.high %v1121, %v1121
      %v1144 = vcombine.high %v1128, %v1128
      %v1145 = vcombine.high %v1135, %v1135
      %v1146 = vcombine.high %v1142, %v1142
      %v1147 = vcombine.high %v1037, %v1037
      %v1149 = vunpack.c.l.s4 1966171168
      %v1150 = vunpack.c.0.s8 %v1149
      %v1151 = vlaneseq
      %v1152 = vshrl.u32 %v1151, 7
      %v1153 = vsub.s32 %v1150, %v1152
      %v1154 = vrot.slane %v1037, %v1153
      %v1156 = vunpack.c.l.s4 1966171168
      %v1157 = vunpack.c.0.s8 %v1156
      %v1158 = vlaneseq
      %v1159 = vshrl.u32 %v1158, 7
      %v1160 = vsub.s32 %v1157, %v1159
      %v1161 = vrot.slane %v1147, %v1160
      %v1162 = vcombine.high %v1154, %v1154
      %v1163 = vcombine.high %v1161, %v1161
      %v1165 = vunpack.c.l.s4 1966171168
      %v1166 = vunpack.c.0.s8 %v1165
      %v1167 = vlaneseq
      %v1168 = vshrl.u32 %v1167, 7
      %v1169 = vsub.s32 %v1166, %v1168
      %v1170 = vrot.slane %v1154, %v1169
      %v1172 = vunpack.c.l.s4 1966171168
      %v1173 = vunpack.c.0.s8 %v1172
      %v1174 = vlaneseq
      %v1175 = vshrl.u32 %v1174, 7
      %v1176 = vsub.s32 %v1173, %v1175
      %v1177 = vrot.slane %v1161, %v1176
      %v1179 = vunpack.c.l.s4 1966171168
      %v1180 = vunpack.c.0.s8 %v1179
      %v1181 = vlaneseq
      %v1182 = vshrl.u32 %v1181, 7
      %v1183 = vsub.s32 %v1180, %v1182
      %v1184 = vrot.slane %v1162, %v1183
      %v1186 = vunpack.c.l.s4 1966171168
      %v1187 = vunpack.c.0.s8 %v1186
      %v1188 = vlaneseq
      %v1189 = vshrl.u32 %v1188, 7
      %v1190 = vsub.s32 %v1187, %v1189
      %v1191 = vrot.slane %v1163, %v1190
      %v1192 = vcombine.high %v1170, %v1170
      %v1193 = vcombine.high %v1177, %v1177
      %v1194 = vcombine.high %v1184, %v1184
      %v1195 = vcombine.high %v1191, %v1191
      %v1196 = vcombine.high %v1038, %v1038
      %v1198 = vunpack.c.l.s4 1966171168
      %v1199 = vunpack.c.0.s8 %v1198
      %v1200 = vlaneseq
      %v1201 = vshrl.u32 %v1200, 7
      %v1202 = vsub.s32 %v1199, %v1201
      %v1203 = vrot.slane %v1038, %v1202
      %v1205 = vunpack.c.l.s4 1966171168
      %v1206 = vunpack.c.0.s8 %v1205
      %v1207 = vlaneseq
      %v1208 = vshrl.u32 %v1207, 7
      %v1209 = vsub.s32 %v1206, %v1208
      %v1210 = vrot.slane %v1196, %v1209
      %v1211 = vcombine.high %v1203, %v1203
      %v1212 = vcombine.high %v1210, %v1210
      %v1214 = vunpack.c.l.s4 1966171168
      %v1215 = vunpack.c.0.s8 %v1214
      %v1216 = vlaneseq
      %v1217 = vshrl.u32 %v1216, 7
      %v1218 = vsub.s32 %v1215, %v1217
      %v1219 = vrot.slane %v1203, %v1218
      %v1221 = vunpack.c.l.s4 1966171168
      %v1222 = vunpack.c.0.s8 %v1221
      %v1223 = vlaneseq
      %v1224 = vshrl.u32 %v1223, 7
      %v1225 = vsub.s32 %v1222, %v1224
      %v1226 = vrot.slane %v1210, %v1225
      %v1228 = vunpack.c.l.s4 1966171168
      %v1229 = vunpack.c.0.s8 %v1228
      %v1230 = vlaneseq
      %v1231 = vshrl.u32 %v1230, 7
      %v1232 = vsub.s32 %v1229, %v1231
      %v1233 = vrot.slane %v1211, %v1232
      %v1235 = vunpack.c.l.s4 1966171168
      %v1236 = vunpack.c.0.s8 %v1235
      %v1237 = vlaneseq
      %v1238 = vshrl.u32 %v1237, 7
      %v1239 = vsub.s32 %v1236, %v1238
      %v1240 = vrot.slane %v1212, %v1239
      %v1241 = vcombine.high %v1219, %v1219
      %v1242 = vcombine.high %v1226, %v1226
      %v1243 = vcombine.high %v1233, %v1233
      %v1244 = vcombine.high %v1240, %v1240
      %v1245 = vcombine.high %v1039, %v1039
      %v1247 = vunpack.c.l.s4 1966171168
      %v1248 = vunpack.c.0.s8 %v1247
      %v1249 = vlaneseq
      %v1250 = vshrl.u32 %v1249, 7
      %v1251 = vsub.s32 %v1248, %v1250
      %v1252 = vrot.slane %v1039, %v1251
      %v1254 = vunpack.c.l.s4 1966171168
      %v1255 = vunpack.c.0.s8 %v1254
      %v1256 = vlaneseq
      %v1257 = vshrl.u32 %v1256, 7
      %v1258 = vsub.s32 %v1255, %v1257
      %v1259 = vrot.slane %v1245, %v1258
      %v1260 = vcombine.high %v1252, %v1252
      %v1261 = vcombine.high %v1259, %v1259
      %v1263 = vunpack.c.l.s4 1966171168
      %v1264 = vunpack.c.0.s8 %v1263
      %v1265 = vlaneseq
      %v1266 = vshrl.u32 %v1265, 7
      %v1267 = vsub.s32 %v1264, %v1266
      %v1268 = vrot.slane %v1252, %v1267
      %v1270 = vunpack.c.l.s4 1966171168
      %v1271 = vunpack.c.0.s8 %v1270
      %v1272 = vlaneseq
      %v1273 = vshrl.u32 %v1272, 7
      %v1274 = vsub.s32 %v1271, %v1273
      %v1275 = vrot.slane %v1259, %v1274
      %v1277 = vunpack.c.l.s4 1966171168
      %v1278 = vunpack.c.0.s8 %v1277
      %v1279 = vlaneseq
      %v1280 = vshrl.u32 %v1279, 7
      %v1281 = vsub.s32 %v1278, %v1280
      %v1282 = vrot.slane %v1260, %v1281
      %v1284 = vunpack.c.l.s4 1966171168
      %v1285 = vunpack.c.0.s8 %v1284
      %v1286 = vlaneseq
      %v1287 = vshrl.u32 %v1286, 7
      %v1288 = vsub.s32 %v1285, %v1287
      %v1289 = vrot.slane %v1261, %v1288
      %v1290 = vcombine.high %v1268, %v1268
      %v1291 = vcombine.high %v1275, %v1275
      %v1292 = vcombine.high %v1282, %v1282
      %v1293 = vcombine.high %v1289, %v1289
      %v1294 = vcombine.high %v1040, %v1040
      %v1296 = vunpack.c.l.s4 1966171168
      %v1297 = vunpack.c.0.s8 %v1296
      %v1298 = vlaneseq
      %v1299 = vshrl.u32 %v1298, 7
      %v1300 = vsub.s32 %v1297, %v1299
      %v1301 = vrot.slane %v1040, %v1300
      %v1303 = vunpack.c.l.s4 1966171168
      %v1304 = vunpack.c.0.s8 %v1303
      %v1305 = vlaneseq
      %v1306 = vshrl.u32 %v1305, 7
      %v1307 = vsub.s32 %v1304, %v1306
      %v1308 = vrot.slane %v1294, %v1307
      %v1309 = vcombine.high %v1301, %v1301
      %v1310 = vcombine.high %v1308, %v1308
      %v1312 = vunpack.c.l.s4 1966171168
      %v1313 = vunpack.c.0.s8 %v1312
      %v1314 = vlaneseq
      %v1315 = vshrl.u32 %v1314, 7
      %v1316 = vsub.s32 %v1313, %v1315
      %v1317 = vrot.slane %v1301, %v1316
      %v1319 = vunpack.c.l.s4 1966171168
      %v1320 = vunpack.c.0.s8 %v1319
      %v1321 = vlaneseq
      %v1322 = vshrl.u32 %v1321, 7
      %v1323 = vsub.s32 %v1320, %v1322
      %v1324 = vrot.slane %v1308, %v1323
      %v1326 = vunpack.c.l.s4 1966171168
      %v1327 = vunpack.c.0.s8 %v1326
      %v1328 = vlaneseq
      %v1329 = vshrl.u32 %v1328, 7
      %v1330 = vsub.s32 %v1327, %v1329
      %v1331 = vrot.slane %v1309, %v1330
      %v1333 = vunpack.c.l.s4 1966171168
      %v1334 = vunpack.c.0.s8 %v1333
      %v1335 = vlaneseq
      %v1336 = vshrl.u32 %v1335, 7
      %v1337 = vsub.s32 %v1334, %v1336
      %v1338 = vrot.slane %v1310, %v1337
      %v1339 = vcombine.high %v1317, %v1317
      %v1340 = vcombine.high %v1324, %v1324
      %v1341 = vcombine.high %v1331, %v1331
      %v1342 = vcombine.high %v1338, %v1338
      %v1344 = vunpack.c.l.s4 1966171168
      %v1345 = vunpack.c.0.s8 %v1344
      %v1346 = vlaneseq
      %v1347 = vshrl.u32 %v1346, 7
      %v1348 = vsub.s32 %v1345, %v1347
      %v1349 = vrot.slane %v1041, %v1348
      %v1351 = vunpack.c.l.s4 1966171168
      %v1352 = vunpack.c.0.s8 %v1351
      %v1353 = vlaneseq
      %v1354 = vshrl.u32 %v1353, 7
      %v1355 = vsub.s32 %v1352, %v1354
      %v1356 = vrot.slane %v1349, %v1355
      %v1357 = vcombine.low %v1072, %v1086
      %v1358 = vcombine.low %v1094, %v1096
      %v1359 = vcombine.low %v1079, %v1093
      %v1361 = vunpack.c.l.s4 1966171168
      %v1362 = vunpack.c.0.s8 %v1361
      %v1363 = vlaneseq
      %v1364 = vshrl.u32 %v1363, 7
      %v1365 = vsub.s32 %v1362, %v1364
      %v1366 = vrot.slane %v1357, %v1365
      %v1368 = vunpack.c.l.s4 1966171168
      %v1369 = vunpack.c.0.s8 %v1368
      %v1370 = vlaneseq
      %v1371 = vshrl.u32 %v1370, 7
      %v1372 = vsub.s32 %v1369, %v1371
      %v1373 = vrot.slane %v1358, %v1372
      %v1375 = vunpack.c.l.s4 1966171168
      %v1376 = vunpack.c.0.s8 %v1375
      %v1377 = vlaneseq
      %v1378 = vshrl.u32 %v1377, 7
      %v1379 = vsub.s32 %v1376, %v1378
      %v1380 = vrot.slane %v1359, %v1379
      %v1382 = vunpack.c.l.s4 1966171168
      %v1383 = vunpack.c.0.s8 %v1382
      %v1384 = vlaneseq
      %v1385 = vshrl.u32 %v1384, 7
      %v1386 = vsub.s32 %v1383, %v1385
      %v1387 = vrot.slane %v1095, %v1386
      %v1388 = vcombine.low %v1366, %v1373
      %v1389 = vcombine.low %v1380, %v1387
      %v1391 = vunpack.c.l.s4 1966171168
      %v1392 = vunpack.c.0.s8 %v1391
      %v1393 = vlaneseq
      %v1394 = vshrl.u32 %v1393, 7
      %v1395 = vsub.s32 %v1392, %v1394
      %v1396 = vrot.slane %v1388, %v1395
      %v1398 = vunpack.c.l.s4 1966171168
      %v1399 = vunpack.c.0.s8 %v1398
      %v1400 = vlaneseq
      %v1401 = vshrl.u32 %v1400, 7
      %v1402 = vsub.s32 %v1399, %v1401
      %v1403 = vrot.slane %v1389, %v1402
      %v1404 = vcombine.low %v1396, %v1403
      %v1405 = vcombine.low %v1097, %v1121
      %v1406 = vcombine.low %v1135, %v1143
      %v1407 = vcombine.low %v1145, %v1128
      %v1409 = vunpack.c.l.s4 1966171168
      %v1410 = vunpack.c.0.s8 %v1409
      %v1411 = vlaneseq
      %v1412 = vshrl.u32 %v1411, 7
      %v1413 = vsub.s32 %v1410, %v1412
      %v1414 = vrot.slane %v1405, %v1413
      %v1416 = vunpack.c.l.s4 1966171168
      %v1417 = vunpack.c.0.s8 %v1416
      %v1418 = vlaneseq
      %v1419 = vshrl.u32 %v1418, 7
      %v1420 = vsub.s32 %v1417, %v1419
      %v1421 = vrot.slane %v1406, %v1420
      %v1423 = vunpack.c.l.s4 1966171168
      %v1424 = vunpack.c.0.s8 %v1423
      %v1425 = vlaneseq
      %v1426 = vshrl.u32 %v1425, 7
      %v1427 = vsub.s32 %v1424, %v1426
      %v1428 = vrot.slane %v1407, %v1427
      %v1430 = vunpack.c.l.s4 1966171168
      %v1431 = vunpack.c.0.s8 %v1430
      %v1432 = vlaneseq
      %v1433 = vshrl.u32 %v1432, 7
      %v1434 = vsub.s32 %v1431, %v1433
      %v1435 = vrot.slane %v1142, %v1434
      %v1436 = vcombine.low %v1414, %v1421
      %v1437 = vcombine.low %v1428, %v1435
      %v1439 = vunpack.c.l.s4 1966171168
      %v1440 = vunpack.c.0.s8 %v1439
      %v1441 = vlaneseq
      %v1442 = vshrl.u32 %v1441, 7
      %v1443 = vsub.s32 %v1440, %v1442
      %v1444 = vrot.slane %v1436, %v1443
      %v1446 = vunpack.c.l.s4 1966171168
      %v1447 = vunpack.c.0.s8 %v1446
      %v1448 = vlaneseq
      %v1449 = vshrl.u32 %v1448, 7
      %v1450 = vsub.s32 %v1447, %v1449
      %v1451 = vrot.slane %v1437, %v1450
      %v1452 = vcombine.low %v1444, %v1451
      %v1453 = vcombine.low %v1144, %v1146
      %v1454 = vcombine.low %v1170, %v1184
      %v1455 = vcombine.low %v1192, %v1194
      %v1457 = vunpack.c.l.s4 1966171168
      %v1458 = vunpack.c.0.s8 %v1457
      %v1459 = vlaneseq
      %v1460 = vshrl.u32 %v1459, 7
      %v1461 = vsub.s32 %v1458, %v1460
      %v1462 = vrot.slane %v1453, %v1461
      %v1464 = vunpack.c.l.s4 1966171168
      %v1465 = vunpack.c.0.s8 %v1464
      %v1466 = vlaneseq
      %v1467 = vshrl.u32 %v1466, 7
      %v1468 = vsub.s32 %v1465, %v1467
      %v1469 = vrot.slane %v1454, %v1468
      %v1471 = vunpack.c.l.s4 1966171168
      %v1472 = vunpack.c.0.s8 %v1471
      %v1473 = vlaneseq
      %v1474 = vshrl.u32 %v1473, 7
      %v1475 = vsub.s32 %v1472, %v1474
      %v1476 = vrot.slane %v1455, %v1475
      %v1478 = vunpack.c.l.s4 1966171168
      %v1479 = vunpack.c.0.s8 %v1478
      %v1480 = vlaneseq
      %v1481 = vshrl.u32 %v1480, 7
      %v1482 = vsub.s32 %v1479, %v1481
      %v1483 = vrot.slane %v1177, %v1482
      %v1484 = vcombine.low %v1462, %v1469
      %v1485 = vcombine.low %v1476, %v1483
      %v1487 = vunpack.c.l.s4 1966171168
      %v1488 = vunpack.c.0.s8 %v1487
      %v1489 = vlaneseq
      %v1490 = vshrl.u32 %v1489, 7
      %v1491 = vsub.s32 %v1488, %v1490
      %v1492 = vrot.slane %v1484, %v1491
      %v1494 = vunpack.c.l.s4 1966171168
      %v1495 = vunpack.c.0.s8 %v1494
      %v1496 = vlaneseq
      %v1497 = vshrl.u32 %v1496, 7
      %v1498 = vsub.s32 %v1495, %v1497
      %v1499 = vrot.slane %v1485, %v1498
      %v1500 = vcombine.low %v1492, %v1499
      %v1501 = vcombine.low %v1191, %v1193
      %v1502 = vcombine.low %v1195, %v1219
      %v1503 = vcombine.low %v1233, %v1241
      %v1505 = vunpack.c.l.s4 1966171168
      %v1506 = vunpack.c.0.s8 %v1505
      %v1507 = vlaneseq
      %v1508 = vshrl.u32 %v1507, 7
      %v1509 = vsub.s32 %v1506, %v1508
      %v1510 = vrot.slane %v1501, %v1509
      %v1512 = vunpack.c.l.s4 1966171168
      %v1513 = vunpack.c.0.s8 %v1512
      %v1514 = vlaneseq
      %v1515 = vshrl.u32 %v1514, 7
      %v1516 = vsub.s32 %v1513, %v1515
      %v1517 = vrot.slane %v1502, %v1516
      %v1519 = vunpack.c.l.s4 1966171168
      %v1520 = vunpack.c.0.s8 %v1519
      %v1521 = vlaneseq
      %v1522 = vshrl.u32 %v1521, 7
      %v1523 = vsub.s32 %v1520, %v1522
      %v1524 = vrot.slane %v1503, %v1523
      %v1526 = vunpack.c.l.s4 1966171168
      %v1527 = vunpack.c.0.s8 %v1526
      %v1528 = vlaneseq
      %v1529 = vshrl.u32 %v1528, 7
      %v1530 = vsub.s32 %v1527, %v1529
      %v1531 = vrot.slane %v1243, %v1530
      %v1532 = vcombine.low %v1510, %v1517
      %v1533 = vcombine.low %v1524, %v1531
      %v1535 = vunpack.c.l.s4 1966171168
      %v1536 = vunpack.c.0.s8 %v1535
      %v1537 = vlaneseq
      %v1538 = vshrl.u32 %v1537, 7
      %v1539 = vsub.s32 %v1536, %v1538
      %v1540 = vrot.slane %v1532, %v1539
      %v1542 = vunpack.c.l.s4 1966171168
      %v1543 = vunpack.c.0.s8 %v1542
      %v1544 = vlaneseq
      %v1545 = vshrl.u32 %v1544, 7
      %v1546 = vsub.s32 %v1543, %v1545
      %v1547 = vrot.slane %v1533, %v1546
      %v1548 = vcombine.low %v1540, %v1547
      %v1549 = vcombine.low %v1226, %v1240
      %v1550 = vcombine.low %v1242, %v1244
      %v1551 = vcombine.low %v1268, %v1282
      %v1553 = vunpack.c.l.s4 1966171168
      %v1554 = vunpack.c.0.s8 %v1553
      %v1555 = vlaneseq
      %v1556 = vshrl.u32 %v1555, 7
      %v1557 = vsub.s32 %v1554, %v1556
      %v1558 = vrot.slane %v1549, %v1557
      %v1560 = vunpack.c.l.s4 1966171168
      %v1561 = vunpack.c.0.s8 %v1560
      %v1562 = vlaneseq
      %v1563 = vshrl.u32 %v1562, 7
      %v1564 = vsub.s32 %v1561, %v1563
      %v1565 = vrot.slane %v1550, %v1564
      %v1567 = vunpack.c.l.s4 1966171168
      %v1568 = vunpack.c.0.s8 %v1567
      %v1569 = vlaneseq
      %v1570 = vshrl.u32 %v1569, 7
      %v1571 = vsub.s32 %v1568, %v1570
      %v1572 = vrot.slane %v1551, %v1571
      %v1574 = vunpack.c.l.s4 1966171168
      %v1575 = vunpack.c.0.s8 %v1574
      %v1576 = vlaneseq
      %v1577 = vshrl.u32 %v1576, 7
      %v1578 = vsub.s32 %v1575, %v1577
      %v1579 = vrot.slane %v1290, %v1578
      %v1580 = vcombine.low %v1558, %v1565
      %v1581 = vcombine.low %v1572, %v1579
      %v1583 = vunpack.c.l.s4 1966171168
      %v1584 = vunpack.c.0.s8 %v1583
      %v1585 = vlaneseq
      %v1586 = vshrl.u32 %v1585, 7
      %v1587 = vsub.s32 %v1584, %v1586
      %v1588 = vrot.slane %v1580, %v1587
      %v1590 = vunpack.c.l.s4 1966171168
      %v1591 = vunpack.c.0.s8 %v1590
      %v1592 = vlaneseq
      %v1593 = vshrl.u32 %v1592, 7
      %v1594 = vsub.s32 %v1591, %v1593
      %v1595 = vrot.slane %v1581, %v1594
      %v1596 = vcombine.low %v1588, %v1595
      %v1597 = vcombine.low %v1292, %v1275
      %v1598 = vcombine.low %v1289, %v1291
      %v1599 = vcombine.low %v1293, %v1317
      %v1601 = vunpack.c.l.s4 1966171168
      %v1602 = vunpack.c.0.s8 %v1601
      %v1603 = vlaneseq
      %v1604 = vshrl.u32 %v1603, 7
      %v1605 = vsub.s32 %v1602, %v1604
      %v1606 = vrot.slane %v1597, %v1605
      %v1608 = vunpack.c.l.s4 1966171168
      %v1609 = vunpack.c.0.s8 %v1608
      %v1610 = vlaneseq
      %v1611 = vshrl.u32 %v1610, 7
      %v1612 = vsub.s32 %v1609, %v1611
      %v1613 = vrot.slane %v1598, %v1612
      %v1615 = vunpack.c.l.s4 1966171168
      %v1616 = vunpack.c.0.s8 %v1615
      %v1617 = vlaneseq
      %v1618 = vshrl.u32 %v1617, 7
      %v1619 = vsub.s32 %v1616, %v1618
      %v1620 = vrot.slane %v1599, %v1619
      %v1622 = vunpack.c.l.s4 1966171168
      %v1623 = vunpack.c.0.s8 %v1622
      %v1624 = vlaneseq
      %v1625 = vshrl.u32 %v1624, 7
      %v1626 = vsub.s32 %v1623, %v1625
      %v1627 = vrot.slane %v1331, %v1626
      %v1628 = vcombine.low %v1606, %v1613
      %v1629 = vcombine.low %v1620, %v1627
      %v1631 = vunpack.c.l.s4 1966171168
      %v1632 = vunpack.c.0.s8 %v1631
      %v1633 = vlaneseq
      %v1634 = vshrl.u32 %v1633, 7
      %v1635 = vsub.s32 %v1632, %v1634
      %v1636 = vrot.slane %v1628, %v1635
      %v1638 = vunpack.c.l.s4 1966171168
      %v1639 = vunpack.c.0.s8 %v1638
      %v1640 = vlaneseq
      %v1641 = vshrl.u32 %v1640, 7
      %v1642 = vsub.s32 %v1639, %v1641
      %v1643 = vrot.slane %v1629, %v1642
      %v1644 = vcombine.low %v1636, %v1643
      %v1645 = vcombine.low %v1339, %v1341
      %v1646 = vcombine.low %v1324, %v1338
      %v1647 = vcombine.low %v1340, %v1342
      %v1649 = vunpack.c.l.s4 1966171168
      %v1650 = vunpack.c.0.s8 %v1649
      %v1651 = vlaneseq
      %v1652 = vshrl.u32 %v1651, 7
      %v1653 = vsub.s32 %v1650, %v1652
      %v1654 = vrot.slane %v1645, %v1653
      %v1656 = vunpack.c.l.s4 1966171168
      %v1657 = vunpack.c.0.s8 %v1656
      %v1658 = vlaneseq
      %v1659 = vshrl.u32 %v1658, 7
      %v1660 = vsub.s32 %v1657, %v1659
      %v1661 = vrot.slane %v1646, %v1660
      %v1663 = vunpack.c.l.s4 1966171168
      %v1664 = vunpack.c.0.s8 %v1663
      %v1665 = vlaneseq
      %v1666 = vshrl.u32 %v1665, 7
      %v1667 = vsub.s32 %v1664, %v1666
      %v1668 = vrot.slane %v1647, %v1667
      %v1670 = vunpack.c.l.s4 1966171168
      %v1671 = vunpack.c.0.s8 %v1670
      %v1672 = vlaneseq
      %v1673 = vshrl.u32 %v1672, 7
      %v1674 = vsub.s32 %v1671, %v1673
      %v1675 = vrot.slane %v1356, %v1674
      %v1676 = vcombine.low %v1654, %v1661
      %v1677 = vcombine.low %v1668, %v1675
      %v1679 = vunpack.c.l.s4 1966171168
      %v1680 = vunpack.c.0.s8 %v1679
      %v1681 = vlaneseq
      %v1682 = vshrl.u32 %v1681, 7
      %v1683 = vsub.s32 %v1680, %v1682
      %v1684 = vrot.slane %v1676, %v1683
      %v1686 = vunpack.c.l.s4 1966171168
      %v1687 = vunpack.c.0.s8 %v1686
      %v1688 = vlaneseq
      %v1689 = vshrl.u32 %v1688, 7
      %v1690 = vsub.s32 %v1687, %v1689
      %v1691 = vrot.slane %v1677, %v1690
      %v1692 = vcombine.low %v1684, %v1691
      %vm1700 = vcmask 63488
      %1701 = vst.msk [vmem:[#allocation2] sm:$0x7f] %vm1700, %v1404
      %1702 = vst.msk [vmem:[#allocation2 + $0x8] sm:$0x7f] %vm1700, %v1452
      %1703 = vst.msk [vmem:[#allocation2 + $0x10] sm:$0x7f] %vm1700, %v1500
      %1704 = vst.msk [vmem:[#allocation2 + $0x18] sm:$0x7f] %vm1700, %v1548
      %1705 = vst.msk [vmem:[#allocation2 + $0x20] sm:$0x7f] %vm1700, %v1596
      %1706 = vst.msk [vmem:[#allocation2 + $0x28] sm:$0x7f] %vm1700, %v1644
      %1707 = vst.msk [vmem:[#allocation2 + $0x30] sm:$0x7f] %vm1700, %v1692
      %v1708 = vld [vmem:[#allocation2] ss:$2 sm:$0x7]
      %s1709 = scalar_lea.vmem [#allocation2], 16
      %v1710 = vld [vmem:[%s1709] ss:$2 sm:$0x7]
      %s1711 = scalar_lea.vmem [#allocation2], 32
      %v1712 = vld [vmem:[%s1711] ss:$2 sm:$0x7]
      %s1713 = scalar_lea.vmem [#allocation2], 1
      %v1714 = vld [vmem:[%s1713] ss:$2 sm:$0x7]
      %s1715 = scalar_lea.vmem [#allocation2], 17
      %v1716 = vld [vmem:[%s1715] ss:$2 sm:$0x7]
      %s1717 = scalar_lea.vmem [#allocation2], 33
      %v1718 = vld [vmem:[%s1717] ss:$2 sm:$0x7]
      %s1719 = scalar_lea.vmem [#allocation2], 2
      %v1720 = vld [vmem:[%s1719] ss:$2 sm:$0x7]
      %s1721 = scalar_lea.vmem [#allocation2], 18
      %v1722 = vld [vmem:[%s1721] ss:$2 sm:$0x7]
      %s1723 = scalar_lea.vmem [#allocation2], 34
      %v1724 = vld [vmem:[%s1723] ss:$2 sm:$0x7]
      %s1725 = scalar_lea.vmem [#allocation2], 8
      %v1726 = vld [vmem:[%s1725] ss:$2 sm:$0x7]
      %s1727 = scalar_lea.vmem %s1725, 16 [#allocation2]
      %v1728 = vld [vmem:[%s1727] ss:$2 sm:$0x7]
      %s1729 = scalar_lea.vmem %s1725, 32 [#allocation2]
      %v1730 = vld [vmem:[%s1729] ss:$2 sm:$0x7]
      %s1731 = scalar_lea.vmem %s1725, 1 [#allocation2]
      %v1732 = vld [vmem:[%s1731] ss:$2 sm:$0x7]
      %s1733 = scalar_lea.vmem %s1725, 17 [#allocation2]
      %v1734 = vld [vmem:[%s1733] ss:$2 sm:$0x7]
      %s1735 = scalar_lea.vmem %s1725, 33 [#allocation2]
      %v1736 = vld [vmem:[%s1735] ss:$2 sm:$0x7]
      %s1737 = scalar_lea.vmem %s1725, 2 [#allocation2]
      %v1738 = vld [vmem:[%s1737] ss:$2 sm:$0x7]
      %s1739 = scalar_lea.vmem %s1725, 18 [#allocation2]
      %v1740 = vld [vmem:[%s1739] ss:$2 sm:$0x7]
      %s1741 = scalar_lea.vmem %s1725, 34 [#allocation2]
      %v1742 = vld [vmem:[%s1741] ss:$2 sm:$0x7]
      %s1743 = scalar_lea.vmem [#allocation2], 16
      %v1744 = vld [vmem:[%s1743] ss:$2 sm:$0x7]
      %s1745 = scalar_lea.vmem %s1743, 16 [#allocation2]
      %v1746 = vld [vmem:[%s1745] ss:$2 sm:$0x7]
      %s1747 = scalar_lea.vmem %s1743, 32 [#allocation2]
      %v1748 = vld [vmem:[%s1747] ss:$2 sm:$0x7]
      %s1749 = scalar_lea.vmem %s1743, 1 [#allocation2]
      %v1750 = vld [vmem:[%s1749] ss:$2 sm:$0x7]
      %s1751 = scalar_lea.vmem %s1743, 17 [#allocation2]
      %v1752 = vld [vmem:[%s1751] ss:$2 sm:$0x7]
      %s1753 = scalar_lea.vmem %s1743, 33 [#allocation2]
      %v1754 = vld [vmem:[%s1753] ss:$2 sm:$0x7]
      %s1755 = scalar_lea.vmem %s1743, 2 [#allocation2]
      %v1756 = vld [vmem:[%s1755] ss:$2 sm:$0x7]
      %s1757 = scalar_lea.vmem %s1743, 18 [#allocation2]
      %v1758 = vld [vmem:[%s1757] ss:$2 sm:$0x7]
      %s1759 = scalar_lea.vmem %s1743, 34 [#allocation2]
      %v1760 = vld [vmem:[%s1759] ss:$2 sm:$0x7]
      %1764 = vrot.lane.b32.xlu0 %v1714, 8
      %v1765 = vpop.permute.xlu0 %1764
      %1766 = vrot.lane.b32.xlu0 %v1716, 8
      %v1767 = vpop.permute.xlu0 %1766
      %1768 = vrot.lane.b32.xlu0 %v1718, 8
      %v1769 = vpop.permute.xlu0 %1768
      %1776 = vrot.lane.b32.xlu0 %v1720, 16
      %v1777 = vpop.permute.xlu0 %1776
      %1778 = vrot.lane.b32.xlu0 %v1722, 16
      %v1779 = vpop.permute.xlu0 %1778
      %1780 = vrot.lane.b32.xlu0 %v1724, 16
      %v1781 = vpop.permute.xlu0 %1780
      %1788 = vrot.lane.b32.xlu0 %v1726, 24
      %v1789 = vpop.permute.xlu0 %1788
      %1790 = vrot.lane.b32.xlu0 %v1728, 24
      %v1791 = vpop.permute.xlu0 %1790
      %1792 = vrot.lane.b32.xlu0 %v1730, 24
      %v1793 = vpop.permute.xlu0 %1792
      %1800 = vrot.lane.b32.xlu0 %v1732, 32
      %v1801 = vpop.permute.xlu0 %1800
      %1802 = vrot.lane.b32.xlu0 %v1734, 32
      %v1803 = vpop.permute.xlu0 %1802
      %1804 = vrot.lane.b32.xlu0 %v1736, 32
      %v1805 = vpop.permute.xlu0 %1804
      %1812 = vrot.lane.b32.xlu0 %v1738, 40
      %v1813 = vpop.permute.xlu0 %1812
      %1814 = vrot.lane.b32.xlu0 %v1740, 40
      %v1815 = vpop.permute.xlu0 %1814
      %1816 = vrot.lane.b32.xlu0 %v1742, 40
      %v1817 = vpop.permute.xlu0 %1816
      %1824 = vrot.lane.b32.xlu0 %v1744, 48
      %v1825 = vpop.permute.xlu0 %1824
      %1826 = vrot.lane.b32.xlu0 %v1746, 48
      %v1827 = vpop.permute.xlu0 %1826
      %1828 = vrot.lane.b32.xlu0 %v1748, 48
      %v1829 = vpop.permute.xlu0 %1828
      %1836 = vrot.lane.b32.xlu0 %v1750, 56
      %v1837 = vpop.permute.xlu0 %1836
      %1838 = vrot.lane.b32.xlu0 %v1752, 56
      %v1839 = vpop.permute.xlu0 %1838
      %1840 = vrot.lane.b32.xlu0 %v1754, 56
      %v1841 = vpop.permute.xlu0 %1840
      %1848 = vrot.lane.b32.xlu0 %v1756, 64
      %v1849 = vpop.permute.xlu0 %1848
      %1850 = vrot.lane.b32.xlu0 %v1758, 64
      %v1851 = vpop.permute.xlu0 %1850
      %1852 = vrot.lane.b32.xlu0 %v1760, 64
      %v1853 = vpop.permute.xlu0 %1852
      %vm1857 = vcmask 64512
      %v1858 = vsel %vm1857, %v1708, %v1765
      %v1859 = vsel %vm1857, %v1710, %v1767
      %v1860 = vsel %vm1857, %v1712, %v1769
      %vm1861 = vcmask 130048
      %v1862 = vsel %vm1861, %v1858, %v1777
      %v1863 = vsel %vm1861, %v1859, %v1779
      %v1864 = vsel %vm1861, %v1860, %v1781
      %vm1865 = vcmask 195584
      %v1866 = vsel %vm1865, %v1862, %v1789
      %v1867 = vsel %vm1865, %v1863, %v1791
      %v1868 = vsel %vm1865, %v1864, %v1793
      %vm1869 = vcmask 261120
      %v1870 = vsel %vm1869, %v1866, %v1801
      %v1871 = vsel %vm1869, %v1867, %v1803
      %v1872 = vsel %vm1869, %v1868, %v1805
      %vm1873 = vcmask 326656
      %v1874 = vsel %vm1873, %v1870, %v1813
      %v1875 = vsel %vm1873, %v1871, %v1815
      %v1876 = vsel %vm1873, %v1872, %v1817
      %vm1877 = vcmask 392192
      %v1878 = vsel %vm1877, %v1874, %v1825
      %v1879 = vsel %vm1877, %v1875, %v1827
      %v1880 = vsel %vm1877, %v1876, %v1829
      %vm1881 = vcmask 457728
      %v1882 = vsel %vm1881, %v1878, %v1837
      %v1883 = vsel %vm1881, %v1879, %v1839
      %v1884 = vsel %vm1881, %v1880, %v1841
      %vm1885 = vcmask 523264
      %v1886 = vsel %vm1885, %v1882, %v1849
      %v1887 = vsel %vm1885, %v1883, %v1851
      %v1888 = vsel %vm1885, %v1884, %v1853
      %v1893 = vunpack.c.l.s4 1966171168
      %v1894 = vunpack.c.0.s8 %v1893
      %v1895 = vlaneseq
      %v1896 = vshrl.u32 %v1895, 7
      %v1897 = vsub.s32 %v1894, %v1896
      %v1898 = vrot.slane %v1886, %v1897
      %v1899 = vcombine.high %v1898, %v1898
      %v1901 = vunpack.c.l.s4 1966171168
      %v1902 = vunpack.c.0.s8 %v1901
      %v1903 = vlaneseq
      %v1904 = vshrl.u32 %v1903, 7
      %v1905 = vsub.s32 %v1902, %v1904
      %v1906 = vrot.slane %v1898, %v1905
      %v1908 = vunpack.c.l.s4 1966171168
      %v1909 = vunpack.c.0.s8 %v1908
      %v1910 = vlaneseq
      %v1911 = vshrl.u32 %v1910, 7
      %v1912 = vsub.s32 %v1909, %v1911
      %v1913 = vrot.slane %v1899, %v1912
      %v1914 = vcombine.high %v1906, %v1906
      %v1916 = vunpack.c.l.s4 1966171168
      %v1917 = vunpack.c.0.s8 %v1916
      %v1918 = vlaneseq
      %v1919 = vshrl.u32 %v1918, 7
      %v1920 = vsub.s32 %v1917, %v1919
      %v1921 = vrot.slane %v1887, %v1920
      %v1922 = vcombine.high %v1921, %v1921
      %v1924 = vunpack.c.l.s4 1966171168
      %v1925 = vunpack.c.0.s8 %v1924
      %v1926 = vlaneseq
      %v1927 = vshrl.u32 %v1926, 7
      %v1928 = vsub.s32 %v1925, %v1927
      %v1929 = vrot.slane %v1921, %v1928
      %v1931 = vunpack.c.l.s4 1966171168
      %v1932 = vunpack.c.0.s8 %v1931
      %v1933 = vlaneseq
      %v1934 = vshrl.u32 %v1933, 7
      %v1935 = vsub.s32 %v1932, %v1934
      %v1936 = vrot.slane %v1922, %v1935
      %v1937 = vcombine.high %v1929, %v1929
      %v1939 = vunpack.c.l.s4 1966171168
      %v1940 = vunpack.c.0.s8 %v1939
      %v1941 = vlaneseq
      %v1942 = vshrl.u32 %v1941, 7
      %v1943 = vsub.s32 %v1940, %v1942
      %v1944 = vrot.slane %v1888, %v1943
      %v1945 = vcombine.high %v1944, %v1944
      %v1947 = vunpack.c.l.s4 1966171168
      %v1948 = vunpack.c.0.s8 %v1947
      %v1949 = vlaneseq
      %v1950 = vshrl.u32 %v1949, 7
      %v1951 = vsub.s32 %v1948, %v1950
      %v1952 = vrot.slane %v1944, %v1951
      %v1954 = vunpack.c.l.s4 1966171168
      %v1955 = vunpack.c.0.s8 %v1954
      %v1956 = vlaneseq
      %v1957 = vshrl.u32 %v1956, 7
      %v1958 = vsub.s32 %v1955, %v1957
      %v1959 = vrot.slane %v1945, %v1958
      %v1960 = vcombine.high %v1952, %v1952
      %v1961 = vcombine.low %v1906, %v1913
      %v1962 = vcombine.low %v1914, %v1929
      %v1963 = vcombine.low %v1936, %v1937
      %v1964 = vcombine.low %v1952, %v1959
      %v1966 = vunpack.c.l.s4 1966171168
      %v1967 = vunpack.c.0.s8 %v1966
      %v1968 = vlaneseq
      %v1969 = vshrl.u32 %v1968, 7
      %v1970 = vsub.s32 %v1967, %v1969
      %v1971 = vrot.slane %v1961, %v1970
      %v1973 = vunpack.c.l.s4 1966171168
      %v1974 = vunpack.c.0.s8 %v1973
      %v1975 = vlaneseq
      %v1976 = vshrl.u32 %v1975, 7
      %v1977 = vsub.s32 %v1974, %v1976
      %v1978 = vrot.slane %v1962, %v1977
      %v1980 = vunpack.c.l.s4 1966171168
      %v1981 = vunpack.c.0.s8 %v1980
      %v1982 = vlaneseq
      %v1983 = vshrl.u32 %v1982, 7
      %v1984 = vsub.s32 %v1981, %v1983
      %v1985 = vrot.slane %v1963, %v1984
      %v1987 = vunpack.c.l.s4 1966171168
      %v1988 = vunpack.c.0.s8 %v1987
      %v1989 = vlaneseq
      %v1990 = vshrl.u32 %v1989, 7
      %v1991 = vsub.s32 %v1988, %v1990
      %v1992 = vrot.slane %v1964, %v1991
      %v1993 = vcombine.low %v1971, %v1978
      %v1994 = vcombine.low %v1985, %v1992
      %v1996 = vunpack.c.l.s4 1966171168
      %v1997 = vunpack.c.0.s8 %v1996
      %v1998 = vlaneseq
      %v1999 = vshrl.u32 %v1998, 7
      %v2000 = vsub.s32 %v1997, %v1999
      %v2001 = vrot.slane %v1993, %v2000
      %v2003 = vunpack.c.l.s4 1966171168
      %v2004 = vunpack.c.0.s8 %v2003
      %v2005 = vlaneseq
      %v2006 = vshrl.u32 %v2005, 7
      %v2007 = vsub.s32 %v2004, %v2006
      %v2008 = vrot.slane %v1994, %v2007
      %v2009 = vcombine.low %v2001, %v2008
      %v2011 = vunpack.c.l.s4 1966171168
      %v2012 = vunpack.c.0.s8 %v2011
      %v2013 = vlaneseq
      %v2014 = vshrl.u32 %v2013, 7
      %v2015 = vsub.s32 %v2012, %v2014
      %v2016 = vrot.slane %v1960, %v2015
      %v2018 = vunpack.c.l.s4 1966171168
      %v2019 = vunpack.c.0.s8 %v2018
      %v2020 = vlaneseq
      %v2021 = vshrl.u32 %v2020, 7
      %v2022 = vsub.s32 %v2019, %v2021
      %v2023 = vrot.slane %v2016, %v2022
      %v2026 = vpack.c.bf16 %v2023, %v2009
      %v2027 = vld [vmem:[%s3] sm:$0xf]
      %v2028 = vld [vmem:[%s3 + $0x4] sm:$0xf]
      %v2029 = vld [vmem:[%s3 + $0x8] sm:$0xf]
      %v2030 = vld [vmem:[%s3 + $0xc] sm:$0xf]
      %v2031 = vld [vmem:[%s3 + $0x10] sm:$0xf]
      %v2032 = vld [vmem:[%s3 + $0x14] sm:$0xf]
      %v2033 = vld [vmem:[%s3 + $0x18] sm:$0xf]
      %v2034 = vld [vmem:[%s3 + $0x1c] sm:$0xf]
      %v2035 = vld [vmem:[%s3 + $0x20] sm:$0xf]
      %v2036 = vld [vmem:[%s4] sm:$0x1]
      %v2038 = vlaneseq
      %v2039 = vshrl.u32 %v2038, 7
      %v2040 = vsub.s32 0, %v2039
      %v2041 = vrot.slane %v2036, %v2040
      %v2052 = vunpack.c.l.b16 %v2027
      %v2053 = vunpack.c.l.b16 %v2028
      %v2054 = vunpack.c.l.b16 %v2029
      %v2055 = vunpack.c.l.b16 %v2030
      %v2056 = vunpack.c.l.b16 %v2031
      %v2057 = vunpack.c.l.b16 %v2032
      %v2058 = vunpack.c.l.b16 %v2033
      %v2059 = vunpack.c.l.b16 %v2034
      %v2060 = vunpack.c.l.b16 %v2035
      %v2061 = vpack.c.b16 %v2053, %v2052
      %v2062 = vpack.c.b16 %v2055, %v2054
      %v2063 = vpack.c.b16 %v2057, %v2056
      %v2064 = vpack.c.b16 %v2059, %v2058
      %v2065 = vpack.c.b16 %v2060, %v2060
      %vm2070 = vcmask 588800
      %v2072 = vsel %vm2070, %v2026, 0
      %vm2074 = vcmask 1043456
      %v2076 = vsel %vm2074, %v2065, 0
      %2078 = vmatprep.subr.bf16.mxu0 0
      %2079 = vmatpush1.bf16.msra.mxu0 %v2061
      %2080 = vmatprep.subr.bf16.mxu0 0
      %2081 = vmatpush1.bf16.msra.mxu0 %v2062
      %2082 = vmatprep.subr.bf16.mxu0 0
      %2083 = vmatpush1.bf16.msra.mxu0 %v2063
      %2084 = vmatprep.subr.bf16.mxu0 0
      %2085 = vmatpush1.bf16.msra.mxu0 %v2064
      %2086 = vmatprep.subr.bf16.mxu0 0
      %2087 = vmatpush1.bf16.msra.mxu0 %v2076
      %2088 = vmatprep.subr.bf16.mxu0 0
      %2089 = vmatpush1.bf16.msra.mxu0 0
      %2090 = vmatprep.subr.bf16.mxu0 0
      %2091 = vmatpush1.bf16.msra.mxu0 0
      %2092 = vmatprep.subr.bf16.mxu0 0
      %2093 = vmatpush1.bf16.msra.mxu0 0
      %2094 = vmatprep.subr.bf16.mxu0 0
      %2095 = vmatpush1.bf16.msra.mxu0 0
      %2096 = vmatprep.subr.bf16.mxu0 0
      %2097 = vmatpush1.bf16.msra.mxu0 0
      %2098 = vmatprep.subr.bf16.mxu0 0
      %2099 = vmatpush1.bf16.msra.mxu0 0
      %2100 = vmatprep.subr.bf16.mxu0 0
      %2101 = vmatpush1.bf16.msra.mxu0 0
      %2102 = vmatprep.subr.bf16.mxu0 0
      %2103 = vmatpush1.bf16.msra.mxu0 0
      %2104 = vmatprep.subr.bf16.mxu0 0
      %2105 = vmatpush1.bf16.msra.mxu0 0
      %2106 = vmatprep.subr.bf16.mxu0 0
      %2107 = vmatpush1.bf16.msra.mxu0 0
      %2108 = vmatprep.subr.bf16.mxu0 0
      %2109 = vmatpush1.bf16.msra.mxu0 0
      %2110 = vmatprep.mubr.bf16.mxu0 0
      %2111 = vmatmul.mubr.bf16.gmra.mrb[0].mxu0 %v2072
      %v2112 = vpop.f32.mrb[0].mxu0
      %v2113 = vadd.f32 %v2041, %v2112
      %v2114 = vpop.f32.mrb[0].mxu0
      %v2115 = vpop.f32.mrb[0].mxu0
      %v2116 = vadd.f32 %v2041, %v2115
      %v2117 = vpop.f32.mrb[0].mxu0
      %2118 = vdwg.mxu0
      %v2119 = vmax.f32 %v2113, 0.0
      %v2120 = vmax.f32 %v2116, 0.0
      %v2123 = vcombine.high %v2119, %v2119
      %v2125 = vunpack.c.l.s4 1966171168
      %v2126 = vunpack.c.0.s8 %v2125
      %v2127 = vlaneseq
      %v2128 = vshrl.u32 %v2127, 7
      %v2129 = vsub.s32 %v2126, %v2128
      %v2130 = vrot.slane %v2119, %v2129
      %v2132 = vunpack.c.l.s4 1966171168
      %v2133 = vunpack.c.0.s8 %v2132
      %v2134 = vlaneseq
      %v2135 = vshrl.u32 %v2134, 7
      %v2136 = vsub.s32 %v2133, %v2135
      %v2137 = vrot.slane %v2123, %v2136
      %v2138 = vcombine.high %v2130, %v2130
      %v2139 = vcombine.high %v2137, %v2137
      %v2141 = vunpack.c.l.s4 1966171168
      %v2142 = vunpack.c.0.s8 %v2141
      %v2143 = vlaneseq
      %v2144 = vshrl.u32 %v2143, 7
      %v2145 = vsub.s32 %v2142, %v2144
      %v2146 = vrot.slane %v2130, %v2145
      %v2148 = vunpack.c.l.s4 1966171168
      %v2149 = vunpack.c.0.s8 %v2148
      %v2150 = vlaneseq
      %v2151 = vshrl.u32 %v2150, 7
      %v2152 = vsub.s32 %v2149, %v2151
      %v2153 = vrot.slane %v2137, %v2152
      %v2155 = vunpack.c.l.s4 1966171168
      %v2156 = vunpack.c.0.s8 %v2155
      %v2157 = vlaneseq
      %v2158 = vshrl.u32 %v2157, 7
      %v2159 = vsub.s32 %v2156, %v2158
      %v2160 = vrot.slane %v2138, %v2159
      %v2162 = vunpack.c.l.s4 1966171168
      %v2163 = vunpack.c.0.s8 %v2162
      %v2164 = vlaneseq
      %v2165 = vshrl.u32 %v2164, 7
      %v2166 = vsub.s32 %v2163, %v2165
      %v2167 = vrot.slane %v2139, %v2166
      %v2168 = vcombine.high %v2146, %v2146
      %v2169 = vcombine.high %v2153, %v2153
      %v2170 = vcombine.high %v2160, %v2160
      %v2171 = vcombine.high %v2167, %v2167
      %v2173 = vunpack.c.l.s4 1966171168
      %v2174 = vunpack.c.0.s8 %v2173
      %v2175 = vlaneseq
      %v2176 = vshrl.u32 %v2175, 7
      %v2177 = vsub.s32 %v2174, %v2176
      %v2178 = vrot.slane %v2120, %v2177
      %v2180 = vunpack.c.l.s4 1966171168
      %v2181 = vunpack.c.0.s8 %v2180
      %v2182 = vlaneseq
      %v2183 = vshrl.u32 %v2182, 7
      %v2184 = vsub.s32 %v2181, %v2183
      %v2185 = vrot.slane %v2178, %v2184
      %v2186 = vcombine.low %v2146, %v2160
      %v2188 = vunpack.c.l.s4 1966171168
      %v2189 = vunpack.c.0.s8 %v2188
      %v2190 = vlaneseq
      %v2191 = vshrl.u32 %v2190, 7
      %v2192 = vsub.s32 %v2189, %v2191
      %v2193 = vrot.slane %v2186, %v2192
      %v2195 = vunpack.c.l.s4 1966171168
      %v2196 = vunpack.c.0.s8 %v2195
      %v2197 = vlaneseq
      %v2198 = vshrl.u32 %v2197, 7
      %v2199 = vsub.s32 %v2196, %v2198
      %v2200 = vrot.slane %v2168, %v2199
      %v2201 = vcombine.low %v2193, %v2200
      %v2203 = vunpack.c.l.s4 1966171168
      %v2204 = vunpack.c.0.s8 %v2203
      %v2205 = vlaneseq
      %v2206 = vshrl.u32 %v2205, 7
      %v2207 = vsub.s32 %v2204, %v2206
      %v2208 = vrot.slane %v2201, %v2207
      %v2209 = vcombine.low %v2170, %v2153
      %v2211 = vunpack.c.l.s4 1966171168
      %v2212 = vunpack.c.0.s8 %v2211
      %v2213 = vlaneseq
      %v2214 = vshrl.u32 %v2213, 7
      %v2215 = vsub.s32 %v2212, %v2214
      %v2216 = vrot.slane %v2209, %v2215
      %v2218 = vunpack.c.l.s4 1966171168
      %v2219 = vunpack.c.0.s8 %v2218
      %v2220 = vlaneseq
      %v2221 = vshrl.u32 %v2220, 7
      %v2222 = vsub.s32 %v2219, %v2221
      %v2223 = vrot.slane %v2167, %v2222
      %v2224 = vcombine.low %v2216, %v2223
      %v2226 = vunpack.c.l.s4 1966171168
      %v2227 = vunpack.c.0.s8 %v2226
      %v2228 = vlaneseq
      %v2229 = vshrl.u32 %v2228, 7
      %v2230 = vsub.s32 %v2227, %v2229
      %v2231 = vrot.slane %v2224, %v2230
      %v2232 = vcombine.low %v2169, %v2171
      %v2234 = vunpack.c.l.s4 1966171168
      %v2235 = vunpack.c.0.s8 %v2234
      %v2236 = vlaneseq
      %v2237 = vshrl.u32 %v2236, 7
      %v2238 = vsub.s32 %v2235, %v2237
      %v2239 = vrot.slane %v2232, %v2238
      %v2241 = vunpack.c.l.s4 1966171168
      %v2242 = vunpack.c.0.s8 %v2241
      %v2243 = vlaneseq
      %v2244 = vshrl.u32 %v2243, 7
      %v2245 = vsub.s32 %v2242, %v2244
      %v2246 = vrot.slane %v2185, %v2245
      %v2247 = vcombine.low %v2239, %v2246
      %v2249 = vunpack.c.l.s4 1966171168
      %v2250 = vunpack.c.0.s8 %v2249
      %v2251 = vlaneseq
      %v2252 = vshrl.u32 %v2251, 7
      %v2253 = vsub.s32 %v2250, %v2252
      %v2254 = vrot.slane %v2247, %v2253
      %2258 = vxpose.xlu0.b32.start [1/16] %v2208, 128
      %2259 = vxpose.xlu0.b32.cont [2/16] 0.0, 128
      %2260 = vxpose.xlu0.b32.cont [3/16] 0.0, 128
      %2261 = vxpose.xlu0.b32.cont [4/16] 0.0, 128
      %2262 = vxpose.xlu0.b32.cont [5/16] 0.0, 128
      %2263 = vxpose.xlu0.b32.cont [6/16] 0.0, 128
      %2264 = vxpose.xlu0.b32.cont [7/16] 0.0, 128
      %2265 = vxpose.xlu0.b32.cont [8/16] 0.0, 128
      %2266 = vxpose.xlu0.b32.cont [9/16] 0.0, 128
      %2267 = vxpose.xlu0.b32.cont [10/16] 0.0, 128
      %2268 = vxpose.xlu0.b32.cont [11/16] 0.0, 128
      %2269 = vxpose.xlu0.b32.cont [12/16] 0.0, 128
      %2270 = vxpose.xlu0.b32.cont [13/16] 0.0, 128
      %2271 = vxpose.xlu0.b32.cont [14/16] 0.0, 128
      %2272 = vxpose.xlu0.b32.cont [15/16] 0.0, 128
      %2273 = vxpose.xlu0.b32.end [16/16] 0.0, 128
      %v2274 = vpop.trf.xlu0
      %v2275 = vpop.trf.xlu0
      %v2276 = vpop.trf.xlu0
      %v2277 = vpop.trf.xlu0
      %v2278 = vpop.trf.xlu0
      %v2279 = vpop.trf.xlu0
      %v2280 = vpop.trf.xlu0
      %v2281 = vpop.trf.xlu0
      %v2282 = vpop.trf.xlu0
      %v2283 = vpop.trf.xlu0
      %v2284 = vpop.trf.xlu0
      %v2285 = vpop.trf.xlu0
      %v2286 = vpop.trf.xlu0
      %v2287 = vpop.trf.xlu0
      %v2288 = vpop.trf.xlu0
      %v2289 = vpop.trf.xlu0
      %2290 = vxpose.xlu0.b32.start [1/16] %v2231, 128
      %2291 = vxpose.xlu0.b32.cont [2/16] 0.0, 128
      %2292 = vxpose.xlu0.b32.cont [3/16] 0.0, 128
      %2293 = vxpose.xlu0.b32.cont [4/16] 0.0, 128
      %2294 = vxpose.xlu0.b32.cont [5/16] 0.0, 128
      %2295 = vxpose.xlu0.b32.cont [6/16] 0.0, 128
      %2296 = vxpose.xlu0.b32.cont [7/16] 0.0, 128
      %2297 = vxpose.xlu0.b32.cont [8/16] 0.0, 128
      %2298 = vxpose.xlu0.b32.cont [9/16] 0.0, 128
      %2299 = vxpose.xlu0.b32.cont [10/16] 0.0, 128
      %2300 = vxpose.xlu0.b32.cont [11/16] 0.0, 128
      %2301 = vxpose.xlu0.b32.cont [12/16] 0.0, 128
      %2302 = vxpose.xlu0.b32.cont [13/16] 0.0, 128
      %2303 = vxpose.xlu0.b32.cont [14/16] 0.0, 128
      %2304 = vxpose.xlu0.b32.cont [15/16] 0.0, 128
      %2305 = vxpose.xlu0.b32.end [16/16] 0.0, 128
      %v2306 = vpop.trf.xlu0
      %v2307 = vpop.trf.xlu0
      %v2308 = vpop.trf.xlu0
      %v2309 = vpop.trf.xlu0
      %v2310 = vpop.trf.xlu0
      %v2311 = vpop.trf.xlu0
      %v2312 = vpop.trf.xlu0
      %v2313 = vpop.trf.xlu0
      %v2314 = vpop.trf.xlu0
      %v2315 = vpop.trf.xlu0
      %v2316 = vpop.trf.xlu0
      %v2317 = vpop.trf.xlu0
      %v2318 = vpop.trf.xlu0
      %v2319 = vpop.trf.xlu0
      %v2320 = vpop.trf.xlu0
      %v2321 = vpop.trf.xlu0
      %2322 = vxpose.xlu0.b32.start [1/16] %v2254, 128
      %2323 = vxpose.xlu0.b32.cont [2/16] 0.0, 128
      %2324 = vxpose.xlu0.b32.cont [3/16] 0.0, 128
      %2325 = vxpose.xlu0.b32.cont [4/16] 0.0, 128
      %2326 = vxpose.xlu0.b32.cont [5/16] 0.0, 128
      %2327 = vxpose.xlu0.b32.cont [6/16] 0.0, 128
      %2328 = vxpose.xlu0.b32.cont [7/16] 0.0, 128
      %2329 = vxpose.xlu0.b32.cont [8/16] 0.0, 128
      %2330 = vxpose.xlu0.b32.cont [9/16] 0.0, 128
      %2331 = vxpose.xlu0.b32.cont [10/16] 0.0, 128
      %2332 = vxpose.xlu0.b32.cont [11/16] 0.0, 128
      %2333 = vxpose.xlu0.b32.cont [12/16] 0.0, 128
      %2334 = vxpose.xlu0.b32.cont [13/16] 0.0, 128
      %2335 = vxpose.xlu0.b32.cont [14/16] 0.0, 128
      %2336 = vxpose.xlu0.b32.cont [15/16] 0.0, 128
      %2337 = vxpose.xlu0.b32.end [16/16] 0.0, 128
      %v2338 = vpop.trf.xlu0
      %v2339 = vpop.trf.xlu0
      %v2340 = vpop.trf.xlu0
      %v2341 = vpop.trf.xlu0
      %v2342 = vpop.trf.xlu0
      %v2343 = vpop.trf.xlu0
      %v2344 = vpop.trf.xlu0
      %v2345 = vpop.trf.xlu0
      %v2346 = vpop.trf.xlu0
      %v2347 = vpop.trf.xlu0
      %v2348 = vpop.trf.xlu0
      %v2349 = vpop.trf.xlu0
      %v2350 = vpop.trf.xlu0
      %v2351 = vpop.trf.xlu0
      %v2352 = vpop.trf.xlu0
      %v2353 = vpop.trf.xlu0
      %v2357 = vrot.slane %v2306, 7
      %vm2358 = vcmask 1041409
      %v2359 = vsel %vm2358, %v2357, %v2274
      %v2360 = vrot.slane %v2338, 6
      %vm2361 = vcmask 1042434
      %v2362 = vsel %vm2361, %v2360, %v2359
      %v2364 = vrot.slane %v2274, 1
      %v2365 = vsel %vm2358, %v2306, %v2364
      %v2366 = vrot.slane %v2338, 7
      %v2367 = vsel %vm2361, %v2366, %v2365
      %2368 = vrot.lane.b32.xlu0 %v2367, 3
      %v2369 = vpop.permute.xlu0 %2368
      %v2371 = vrot.slane %v2274, 2
      %v2372 = vrot.slane %v2306, 1
      %v2373 = vsel %vm2358, %v2372, %v2371
      %v2374 = vsel %vm2361, %v2338, %v2373
      %2375 = vrot.lane.b32.xlu0 %v2374, 6
      %v2376 = vpop.permute.xlu0 %2375
      %v2378 = vrot.slane %v2274, 3
      %v2379 = vrot.slane %v2306, 2
      %v2380 = vsel %vm2358, %v2379, %v2378
      %v2381 = vrot.slane %v2338, 1
      %v2382 = vsel %vm2361, %v2381, %v2380
      %2383 = vrot.lane.b32.xlu0 %v2382, 9
      %v2384 = vpop.permute.xlu0 %2383
      %v2386 = vrot.slane %v2274, 4
      %v2387 = vrot.slane %v2306, 3
      %v2388 = vsel %vm2358, %v2387, %v2386
      %v2389 = vrot.slane %v2338, 2
      %v2390 = vsel %vm2361, %v2389, %v2388
      %2391 = vrot.lane.b32.xlu0 %v2390, 12
      %v2392 = vpop.permute.xlu0 %2391
      %v2394 = vrot.slane %v2274, 5
      %v2395 = vrot.slane %v2306, 4
      %v2396 = vsel %vm2358, %v2395, %v2394
      %v2397 = vrot.slane %v2338, 3
      %v2398 = vsel %vm2361, %v2397, %v2396
      %2399 = vrot.lane.b32.xlu0 %v2398, 15
      %v2400 = vpop.permute.xlu0 %2399
      %v2402 = vrot.slane %v2274, 6
      %v2403 = vrot.slane %v2306, 5
      %v2404 = vsel %vm2358, %v2403, %v2402
      %v2405 = vrot.slane %v2338, 4
      %v2406 = vsel %vm2361, %v2405, %v2404
      %2407 = vrot.lane.b32.xlu0 %v2406, 18
      %v2408 = vpop.permute.xlu0 %2407
      %v2410 = vrot.slane %v2274, 7
      %v2411 = vrot.slane %v2306, 6
      %v2412 = vsel %vm2358, %v2411, %v2410
      %v2413 = vrot.slane %v2338, 5
      %v2414 = vsel %vm2361, %v2413, %v2412
      %2415 = vrot.lane.b32.xlu0 %v2414, 21
      %v2416 = vpop.permute.xlu0 %2415
      %vm2418 = vcmask 23552
      %v2419 = vsel %vm2418, %v2362, %v2369
      %vm2420 = vcmask 48128
      %v2421 = vsel %vm2420, %v2419, %v2376
      %vm2422 = vcmask 72704
      %v2423 = vsel %vm2422, %v2421, %v2384
      %vm2424 = vcmask 97280
      %v2425 = vsel %vm2424, %v2423, %v2392
      %vm2426 = vcmask 121856
      %v2427 = vsel %vm2426, %v2425, %v2400
      %vm2428 = vcmask 146432
      %v2429 = vsel %vm2428, %v2427, %v2408
      %vm2430 = vcmask 171008
      %v2431 = vsel %vm2430, %v2429, %v2416
      %vm2432 = vcmask 190464
      %2433 = vst.msk [vmem:[%s256] sm:$0x7] %vm2432, %v2431
      %p2434 = scmp.lt.s32.totalorder %s20, 1
      %s2435 = scalar_select %p2434, %s20, 1
      %p2436 = scmp.lt.s32.totalorder %s21, 0
      %s2437 = scalar_select %p2436, %s21, 0
      %s2438 = sadd.s32 %s2437, %s2435
      %s2439 = smul.addr %s2438, 4
      %s2440 = scalar_lea.vmem %s5, %s2439
      // Predicated region
      $region41: #{tpu_custom_call.1} parent=39 // pred_check
        %p2441 = pneg %p160
      $region42: #{tpu_custom_call.1} parent=39 // pred_check_branch
        %2443 = sbr.rel (%p2441) target = $region44
      $region43: #{tpu_custom_call.1} parent=39 // pred_region
        _
      $region44: #{tpu_custom_call.1} parent=39 // pred_fallthru
        _
    $region40: #{tpu_custom_call.1} parent=5 // pred_fallthru
      _
    %p2444 = scmp.le.s32.totalorder 2, %s11
    // Predicated region
    $region45: #{tpu_custom_call.1} parent=5 // pred_check
      %p2445 = pneg %p2444
    $region46: #{tpu_custom_call.1} parent=5 // pred_check_branch
      %2447 = sbr.rel (%p2445) target = $region48
    $region47: #{tpu_custom_call.1} parent=5 // pred_region
      %s2448 = ssub.s32 %s11, 2
      // Predicated region
      $region49: #{tpu_custom_call.1} parent=47 // pred_check
        %p2449 = pneg %p166
      $region50: #{tpu_custom_call.1} parent=47 // pred_check_branch
        %2451 = sbr.rel (%p2449) target = $region52
      $region51: #{tpu_custom_call.1} parent=47 // pred_region
        %p2452 = scmp.lt.s32.totalorder %s22, 1
        %s2453 = scalar_select %p2452, %s22, 1
        %p2454 = scmp.lt.s32.totalorder %s23, 0
        %s2455 = scalar_select %p2454, %s23, 0
        %s2456 = sadd.s32 %s2455, %s2453
        %s2457 = smul.addr %s2456, 4
        %s2458 = scalar_lea.vmem %s5, %s2457
      $region52: #{tpu_custom_call.1} parent=47 // pred_fallthru
        _
    $region48: #{tpu_custom_call.1} parent=5 // pred_fallthru
      _
  $region6: #{tpu_custom_call.1} parent=0 // loop_footer
    %s15 = sadd.s32 1, %s11
  $region7: #{tpu_custom_call.1} parent=0 // loop_footer_branch
    %10 = sbr.rel target = $region3
  $region8: #{tpu_custom_call.1} parent=0 // loop_exit
    _

</llo_original>
